<compile_context>
chip_gen: v7x
topology: tpu7x:2x2x1
jax: 0.10.0
libtpu: 0.0.40
codegen_flags: <defaults>
</compile_context>

<pallas_src>
import functools
import math

import jax
import jax.numpy as jnp
import numpy as np
from jax import lax
from jax.experimental import pallas as pl
from jax.experimental.pallas import tpu as pltpu

BN_EPS = 1e-5
LOG_2PI = math.log(2.0 * math.pi)
SQRT2 = math.sqrt(2.0)


def _round_up(n, m):
    return ((n + m - 1) // m) * m


# ---------------------------------------------------------------------------
# Pallas kernel
# ---------------------------------------------------------------------------
def mdn_kernel(x_ref, t_ref, w1_ref, wpk_ref, vp_ref, prelu_ref, out_ref,
               *, H, K, seg_h, seg_k):
    x = x_ref[...]                      # [B, D_in]
    t = t_ref[...]                      # [B, 1]

    B = x.shape[0]
    inv_b = 1.0 / float(B)

    # Hoisted constant row of ones used to do the batch reduction on the MXU.
    ones_bt = jnp.ones((1, B), jnp.float32)

    def fc_bn_prelu(z, w, g, b, a):
        h = jnp.dot(z, w, preferred_element_type=jnp.float32)            # [B, H]
        # BatchNorm1d training-mode stats via MXU reductions (biased variance).
        s1 = jnp.dot(ones_bt, h, preferred_element_type=jnp.float32)     # sum h
        s2 = jnp.dot(ones_bt, h * h, preferred_element_type=jnp.float32) # sum h^2
        mean = s1 * inv_b
        var = s2 * inv_b - mean * mean
        hn = (h - mean) * lax.rsqrt(var + BN_EPS) * g + b
        # PReLU (single shared slope, PyTorch default)
        return jnp.where(hn >= 0.0, hn, a * hn)

    # --- unpack the packed parameter row (all slices are tile-aligned prefixes) ---
    g1 = vp_ref[:, 0 * seg_h:0 * seg_h + H]
    b1 = vp_ref[:, 1 * seg_h:1 * seg_h + H]
    g2 = vp_ref[:, 2 * seg_h:2 * seg_h + H]
    b2 = vp_ref[:, 3 * seg_h:3 * seg_h + H]
    g3 = vp_ref[:, 4 * seg_h:4 * seg_h + H]
    b3 = vp_ref[:, 5 * seg_h:5 * seg_h + H]
    b_heads = vp_ref[:, 6 * seg_h:]         # [1, 3*seg_k]  (bpi | bmu | bsig, padded)

    # --- unpack the packed weight slab (tile-aligned prefixes) ---
    w2 = wpk_ref[:, 0:H]
    w3 = wpk_ref[:, seg_h:seg_h + H]
    w_heads = wpk_ref[:, 2 * seg_h:]        # [H, 3*seg_k]  (wpi | wmu | wsig, padded)

    # PReLU slopes as SMEM scalars.
    a1 = prelu_ref[0]
    a2 = prelu_ref[1]
    a3 = prelu_ref[2]

    z = fc_bn_prelu(x, w1_ref[...], g1, b1, a1)
    z = fc_bn_prelu(z, w2, g2, b2, a2)
    z = fc_bn_prelu(z, w3, g3, b3, a3)

    # --- fused pi / mu / sigma heads ---
    # clip(z, ±1000) is only required for the pi head; after BatchNorm |z| << 1000 so
    # applying it to the shared input of the fused matmul is a numerical no-op.
    zc = jnp.clip(z, -1000.0, 1000.0)
    heads = jnp.dot(zc, w_heads, preferred_element_type=jnp.float32) + b_heads  # [B, 3*seg_k]
    pi = heads[:, 0:K]
    mu = jnp.clip(heads[:, seg_k:seg_k + K], -30.0, 30.0)
    pre_log_sigma = jnp.clip(heads[:, 2 * seg_k:2 * seg_k + K], 0.01, 100.0)

    # --- SurvivalMDN_Dist.pred_params_to_parameters ---
    pi_max = jnp.max(pi, axis=-1, keepdims=True)
    pi_exp = jnp.exp(pi - pi_max)
    ws = pi_exp / jnp.sum(pi_exp, axis=-1, keepdims=True)          # softmax
    sigmas = jnp.logaddexp(pre_log_sigma, 0.0)                     # softplus

    # safe_inverse_softplus(t)
    exp_t = jnp.exp(t)
    x_isp = jnp.log(exp_t - 1.0 + 1e-6)                            # [B, 1]
    zscore = (x_isp - mu) / sigmas                                 # [B, K]

    # cdf(t) = sum_k w_k * Phi((x - mu_k)/sigma_k)
    normal_cdf = 0.5 * (1.0 + lax.erf(zscore * (1.0 / SQRT2)))
    cdf = jnp.sum(ws * normal_cdf, axis=-1, keepdims=True)         # [B, 1]
    surv = 1.0 - cdf

    # log_prob(t) = logsumexp_k(log N_k, w_k) + log d/dt isp(t)
    log_pdf_comp = -0.5 * zscore * zscore - jnp.log(sigmas) - 0.5 * LOG_2PI
    a_max = jnp.max(log_pdf_comp, axis=-1, keepdims=True)
    log_pdfs = jnp.log(
        jnp.sum(ws * jnp.exp(log_pdf_comp - a_max), axis=-1, keepdims=True) + 1e-6
    ) + a_max
    log_grad = t - x_isp        # == log(exp(t) / (exp(t) - 1 + 1e-6))
    pdf = jnp.exp(log_pdfs + log_grad)                             # [B, 1]

    # Packed output: [surv | Lambda | lambda]  -> single writeback DMA.
    out_ref[:, 0:1] = surv
    out_ref[:, 1:2] = -jnp.log(surv + 1e-6)
    out_ref[:, 2:3] = pdf / surv


# ---------------------------------------------------------------------------
# Wrapper
# ---------------------------------------------------------------------------
def mdn_forward(features, t, params):
    B = features.shape[0]
    H = params["w1"].shape[1]
    K = params["wpi"].shape[1]

    # Lane-aligned segment widths so every in-kernel slice is tile-aligned.
    seg_h = _round_up(H, 128)
    seg_k = _round_up(K, 128)

    def pad_lanes(a, width):
        extra = width - a.shape[1]
        return a if extra == 0 else jnp.pad(a, ((0, 0), (0, extra)))

    # Pack the many tiny parameter tensors into two VMEM operands + one SMEM scalar
    # vector.  (Under jit with static params this packing folds away / runs once;
    # it could also be precomputed at parameter-prep time.)
    w_packed = jnp.concatenate(
        [pad_lanes(params["w2"], seg_h), pad_lanes(params["w3"], seg_h),
         pad_lanes(params["wpi"], seg_k), pad_lanes(params["wmu"], seg_k),
         pad_lanes(params["wsig"], seg_k)],
        axis=1)                                                   # [H, 2*seg_h + 3*seg_k]
    vparams = jnp.concatenate(
        [pad_lanes(params["g1"], seg_h), pad_lanes(params["b1"], seg_h),
         pad_lanes(params["g2"], seg_h), pad_lanes(params["b2"], seg_h),
         pad_lanes(params["g3"], seg_h), pad_lanes(params["b3"], seg_h),
         pad_lanes(params["bpi"], seg_k), pad_lanes(params["bmu"], seg_k),
         pad_lanes(params["bsig"], seg_k)],
        axis=1)                                                   # [1, 6*seg_h + 3*seg_k]
    prelu = params["prelu"].reshape(3).astype(jnp.float32)        # [3] (SMEM)

    t2 = t.reshape(B, 1).astype(jnp.float32)

    vmem = pltpu.MemorySpace.VMEM
    smem = pltpu.MemorySpace.SMEM

    kernel = functools.partial(mdn_kernel, H=H, K=K, seg_h=seg_h, seg_k=seg_k)

    out = pl.pallas_call(
        kernel,
        out_shape=jax.ShapeDtypeStruct((B, 3), jnp.float32),
        in_specs=[
            pl.BlockSpec(memory_space=vmem),   # features
            pl.BlockSpec(memory_space=vmem),   # t
            pl.BlockSpec(memory_space=vmem),   # w1
            pl.BlockSpec(memory_space=vmem),   # packed w2|w3|heads
            pl.BlockSpec(memory_space=vmem),   # packed gammas/betas/head biases
            pl.BlockSpec(memory_space=smem),   # prelu slopes (scalars)
        ],
        out_specs=pl.BlockSpec(memory_space=vmem),
    )(features, t2, params["w1"], w_packed, vparams, prelu)

    return {
        "survival_func": out[:, 0],
        "Lambda": out[:, 1],
        "lambda": out[:, 2],
    }


# ---------------------------------------------------------------------------
# Pure-JAX reference (mirrors the PyTorch forward, training mode)
# ---------------------------------------------------------------------------
def mdn_forward_ref(features, t, p):
    def blk(z, w, g, b, a):
        h = z @ w
        m = h.mean(0, keepdims=True)
        v = ((h - m) ** 2).mean(0, keepdims=True)
        hn = (h - m) / jnp.sqrt(v + BN_EPS) * g + b
        return jnp.where(hn >= 0, hn, a * hn)

    z = blk(features, p["w1"], p["g1"], p["b1"], p["prelu"][0, 0])
    z = blk(z, p["w2"], p["g2"], p["b2"], p["prelu"][0, 1])
    z = blk(z, p["w3"], p["g3"], p["b3"], p["prelu"][0, 2])

    pi = jnp.clip(z, -1000.0, 1000.0) @ p["wpi"] + p["bpi"]
    mu = jnp.clip(z @ p["wmu"] + p["bmu"], -30.0, 30.0)
    pls = jnp.clip(z @ p["wsig"] + p["bsig"], 0.01, 100.0)

    ws = jax.nn.softmax(pi, axis=-1)
    sig = jax.nn.softplus(pls)

    tt = t[:, None]
    x = jnp.log(jnp.exp(tt) - 1.0 + 1e-6)
    zs = (x - mu) / sig
    cdf = jnp.sum(ws * 0.5 * (1.0 + lax.erf(zs / SQRT2)), -1)
    surv = 1.0 - cdf

    lp = -0.5 * zs ** 2 - jnp.log(sig) - 0.5 * LOG_2PI
    am = lp.max(-1, keepdims=True)
    logpdf = (jnp.log(jnp.sum(ws * jnp.exp(lp - am), -1, keepdims=True) + 1e-6) + am)[:, 0]
    logpdf = logpdf + jnp.log(jnp.exp(t) / (jnp.exp(t) - 1.0 + 1e-6))
    pdf = jnp.exp(logpdf)

    return {"survival_func": surv,
            "Lambda": -jnp.log(surv + 1e-6),
            "lambda": pdf / surv}


# ---------------------------------------------------------------------------
# Deterministic parameter init (matches MukundMDNHelper, init_type='default')
# ---------------------------------------------------------------------------
def init_params(key, D_in, H, K):
    ks = jax.random.split(key, 8)

    def lin_w(k, fan_in, fan_out):  # PyTorch default Linear init, stored [in, out]
        bound = 1.0 / math.sqrt(fan_in)
        return jax.random.uniform(k, (fan_in, fan_out), jnp.float32, -bound, bound)

    def lin_b(k, fan_in, fan_out):
        bound = 1.0 / math.sqrt(fan_in)
        return jax.random.uniform(k, (1, fan_out), jnp.float32, -bound, bound)

    ones_h = jnp.ones((1, H), jnp.float32)
    zeros_h = jnp.zeros((1, H), jnp.float32)

    return {
        "w1": lin_w(ks[0], D_in, H), "g1": ones_h, "b1": zeros_h,
        "w2": lin_w(ks[1], H, H),    "g2": ones_h, "b2": zeros_h,
        "w3": lin_w(ks[2], H, H),    "g3": ones_h, "b3": zeros_h,
        "prelu": jnp.full((1, 3), 0.25, jnp.float32),
        "wpi": lin_w(ks[3], H, K), "bpi": lin_b(ks[4], H, K),
        "wmu": jnp.zeros((H, K), jnp.float32),
        "bmu": jnp.linspace(-3.0, 3.0, K, dtype=jnp.float32).reshape(1, K),
        "wsig": lin_w(ks[5], H, K), "bsig": lin_b(ks[6], H, K),
    }


if __name__ == "__main__":
    B, D_IN, HIDDEN, K = 8, 16, 32, 8

    key = jax.random.PRNGKey(0)
    k_feat, k_t, k_par = jax.random.split(key, 3)

    features = jax.random.normal(k_feat, (B, D_IN), jnp.float32)
    t = jax.random.uniform(k_t, (B,), jnp.float32, 0.5, 3.0)   # positive event times
    params = init_params(k_par, D_IN, HIDDEN, K)

    out = mdn_forward(features, t, params)
    jax.block_until_ready(out)

    ref = mdn_forward_ref(features, t, params)
    for name in ("survival_func", "Lambda", "lambda"):
        np.testing.assert_allclose(np.asarray(out[name]), np.asarray(ref[name]),
                                   rtol=2e-4, atol=2e-5)

    # TODO(synk): eval-only branches (eval_t / survival_seqs / quantile Lambdas)
    # are skipped, matching the module's default training-mode forward.
    print("KERNEL_OK")
</pallas_src>

<mosaic_0001>
module attributes {stable_mosaic.version = 11 : i64} {
  func.func @mdn_kernel(%arg0: memref<8x16xf32, #tpu.memory_space<vmem>>, %arg1: memref<8x1xf32, #tpu.memory_space<vmem>>, %arg2: memref<16x32xf32, #tpu.memory_space<vmem>>, %arg3: memref<32x640xf32, #tpu.memory_space<vmem>>, %arg4: memref<1x1152xf32, #tpu.memory_space<vmem>>, %arg5: memref<3xf32, #tpu.memory_space<smem>>, %arg6: memref<8x3xf32, #tpu.memory_space<vmem>>) attributes {dimension_semantics = [], scalar_prefetch = 0 : i64, scratch_operands = 0 : i64, tpu.core_type = #tpu.core_type<tc>} {
    %c0 = arith.constant 0 : index
    %c0_0 = arith.constant 0 : index
    %0 = vector.load %arg0[%c0, %c0_0] : memref<8x16xf32, #tpu.memory_space<vmem>>, vector<8x16xf32>
    %c0_1 = arith.constant 0 : index
    %c0_2 = arith.constant 0 : index
    %1 = vector.load %arg1[%c0_1, %c0_2] : memref<8x1xf32, #tpu.memory_space<vmem>>, vector<8x1xf32>
    %cst = arith.constant 1.000000e+00 : f32
    %2 = vector.broadcast %cst : f32 to vector<1x8xf32>
    %c0_3 = arith.constant 0 : index
    %c0_4 = arith.constant 0 : index
    %3 = vector.load %arg4[%c0_3, %c0_4] : memref<1x1152xf32, #tpu.memory_space<vmem>>, vector<1x32xf32>
    %c0_5 = arith.constant 0 : index
    %c128 = arith.constant 128 : index
    %4 = vector.load %arg4[%c0_5, %c128] : memref<1x1152xf32, #tpu.memory_space<vmem>>, vector<1x32xf32>
    %c0_6 = arith.constant 0 : index
    %c256 = arith.constant 256 : index
    %5 = vector.load %arg4[%c0_6, %c256] : memref<1x1152xf32, #tpu.memory_space<vmem>>, vector<1x32xf32>
    %c0_7 = arith.constant 0 : index
    %c384 = arith.constant 384 : index
    %6 = vector.load %arg4[%c0_7, %c384] : memref<1x1152xf32, #tpu.memory_space<vmem>>, vector<1x32xf32>
    %c0_8 = arith.constant 0 : index
    %c512 = arith.constant 512 : index
    %7 = vector.load %arg4[%c0_8, %c512] : memref<1x1152xf32, #tpu.memory_space<vmem>>, vector<1x32xf32>
    %c0_9 = arith.constant 0 : index
    %c640 = arith.constant 640 : index
    %8 = vector.load %arg4[%c0_9, %c640] : memref<1x1152xf32, #tpu.memory_space<vmem>>, vector<1x32xf32>
    %c0_10 = arith.constant 0 : index
    %c768 = arith.constant 768 : index
    %9 = vector.load %arg4[%c0_10, %c768] : memref<1x1152xf32, #tpu.memory_space<vmem>>, vector<1x384xf32>
    %c0_11 = arith.constant 0 : index
    %c0_12 = arith.constant 0 : index
    %10 = vector.load %arg3[%c0_11, %c0_12] : memref<32x640xf32, #tpu.memory_space<vmem>>, vector<32x32xf32>
    %c0_13 = arith.constant 0 : index
    %c128_14 = arith.constant 128 : index
    %11 = vector.load %arg3[%c0_13, %c128_14] : memref<32x640xf32, #tpu.memory_space<vmem>>, vector<32x32xf32>
    %c0_15 = arith.constant 0 : index
    %c256_16 = arith.constant 256 : index
    %12 = vector.load %arg3[%c0_15, %c256_16] : memref<32x640xf32, #tpu.memory_space<vmem>>, vector<32x384xf32>
    %c0_17 = arith.constant 0 : index
    %13 = memref.load %arg5[%c0_17] : memref<3xf32, #tpu.memory_space<smem>>
    %c1 = arith.constant 1 : index
    %14 = memref.load %arg5[%c1] : memref<3xf32, #tpu.memory_space<smem>>
    %c2 = arith.constant 2 : index
    %15 = memref.load %arg5[%c2] : memref<3xf32, #tpu.memory_space<smem>>
    %c0_18 = arith.constant 0 : index
    %c0_19 = arith.constant 0 : index
    %16 = vector.load %arg2[%c0_18, %c0_19] : memref<16x32xf32, #tpu.memory_space<vmem>>, vector<16x32xf32>
    %cst_20 = arith.constant dense<0.000000e+00> : vector<8x32xf32>
    %17 = tpu.matmul %0, %16, %cst_20 {dimension_numbers = #tpu.dot_dimension_numbers<[1], [0], [0], [1], [0, 0, 1, 1], [], []>} : vector<8x16xf32>, vector<16x32xf32>, vector<8x32xf32> -> vector<8x32xf32>
    %cst_21 = arith.constant dense<0.000000e+00> : vector<1x32xf32>
    %18 = tpu.matmul %2, %17, %cst_21 {dimension_numbers = #tpu.dot_dimension_numbers<[1], [0], [0], [1], [0, 0, 1, 1], [], []>} : vector<1x8xf32>, vector<8x32xf32>, vector<1x32xf32> -> vector<1x32xf32>
    %19 = arith.mulf %17, %17 : vector<8x32xf32>
    %cst_22 = arith.constant dense<0.000000e+00> : vector<1x32xf32>
    %20 = tpu.matmul %2, %19, %cst_22 {dimension_numbers = #tpu.dot_dimension_numbers<[1], [0], [0], [1], [0, 0, 1, 1], [], []>} : vector<1x8xf32>, vector<8x32xf32>, vector<1x32xf32> -> vector<1x32xf32>
    %cst_23 = arith.constant 1.250000e-01 : f32
    %21 = vector.broadcast %cst_23 : f32 to vector<1x32xf32>
    %22 = arith.mulf %18, %21 : vector<1x32xf32>
    %cst_24 = arith.constant 1.250000e-01 : f32
    %23 = vector.broadcast %cst_24 : f32 to vector<1x32xf32>
    %24 = arith.mulf %20, %23 : vector<1x32xf32>
    %25 = arith.mulf %22, %22 : vector<1x32xf32>
    %26 = arith.subf %24, %25 : vector<1x32xf32>
    %27 = vector.broadcast %22 : vector<1x32xf32> to vector<8x32xf32>
    %28 = arith.subf %17, %27 : vector<8x32xf32>
    %cst_25 = arith.constant 9.99999974E-6 : f32
    %29 = vector.broadcast %cst_25 : f32 to vector<1x32xf32>
    %30 = arith.addf %26, %29 : vector<1x32xf32>
    %31 = math.rsqrt %30 : vector<1x32xf32>
    %32 = vector.broadcast %31 : vector<1x32xf32> to vector<8x32xf32>
    %33 = arith.mulf %28, %32 : vector<8x32xf32>
    %34 = vector.broadcast %3 : vector<1x32xf32> to vector<8x32xf32>
    %35 = arith.mulf %33, %34 : vector<8x32xf32>
    %36 = vector.broadcast %4 : vector<1x32xf32> to vector<8x32xf32>
    %37 = arith.addf %35, %36 : vector<8x32xf32>
    %cst_26 = arith.constant 0.000000e+00 : f32
    %38 = vector.broadcast %cst_26 : f32 to vector<8x32xf32>
    %39 = arith.cmpf oge, %37, %38 : vector<8x32xf32>
    %40 = vector.broadcast %13 : f32 to vector<8x32xf32>
    %41 = arith.mulf %40, %37 : vector<8x32xf32>
    %42 = arith.select %39, %37, %41 : vector<8x32xi1>, vector<8x32xf32>
    %cst_27 = arith.constant dense<0.000000e+00> : vector<8x32xf32>
    %43 = tpu.matmul %42, %10, %cst_27 {dimension_numbers = #tpu.dot_dimension_numbers<[1], [0], [0], [1], [0, 0, 1, 1], [], []>} : vector<8x32xf32>, vector<32x32xf32>, vector<8x32xf32> -> vector<8x32xf32>
    %cst_28 = arith.constant dense<0.000000e+00> : vector<1x32xf32>
    %44 = tpu.matmul %2, %43, %cst_28 {dimension_numbers = #tpu.dot_dimension_numbers<[1], [0], [0], [1], [0, 0, 1, 1], [], []>} : vector<1x8xf32>, vector<8x32xf32>, vector<1x32xf32> -> vector<1x32xf32>
    %45 = arith.mulf %43, %43 : vector<8x32xf32>
    %cst_29 = arith.constant dense<0.000000e+00> : vector<1x32xf32>
    %46 = tpu.matmul %2, %45, %cst_29 {dimension_numbers = #tpu.dot_dimension_numbers<[1], [0], [0], [1], [0, 0, 1, 1], [], []>} : vector<1x8xf32>, vector<8x32xf32>, vector<1x32xf32> -> vector<1x32xf32>
    %cst_30 = arith.constant 1.250000e-01 : f32
    %47 = vector.broadcast %cst_30 : f32 to vector<1x32xf32>
    %48 = arith.mulf %44, %47 : vector<1x32xf32>
    %cst_31 = arith.constant 1.250000e-01 : f32
    %49 = vector.broadcast %cst_31 : f32 to vector<1x32xf32>
    %50 = arith.mulf %46, %49 : vector<1x32xf32>
    %51 = arith.mulf %48, %48 : vector<1x32xf32>
    %52 = arith.subf %50, %51 : vector<1x32xf32>
    %53 = vector.broadcast %48 : vector<1x32xf32> to vector<8x32xf32>
    %54 = arith.subf %43, %53 : vector<8x32xf32>
    %cst_32 = arith.constant 9.99999974E-6 : f32
    %55 = vector.broadcast %cst_32 : f32 to vector<1x32xf32>
    %56 = arith.addf %52, %55 : vector<1x32xf32>
    %57 = math.rsqrt %56 : vector<1x32xf32>
    %58 = vector.broadcast %57 : vector<1x32xf32> to vector<8x32xf32>
    %59 = arith.mulf %54, %58 : vector<8x32xf32>
    %60 = vector.broadcast %5 : vector<1x32xf32> to vector<8x32xf32>
    %61 = arith.mulf %59, %60 : vector<8x32xf32>
    %62 = vector.broadcast %6 : vector<1x32xf32> to vector<8x32xf32>
    %63 = arith.addf %61, %62 : vector<8x32xf32>
    %cst_33 = arith.constant 0.000000e+00 : f32
    %64 = vector.broadcast %cst_33 : f32 to vector<8x32xf32>
    %65 = arith.cmpf oge, %63, %64 : vector<8x32xf32>
    %66 = vector.broadcast %14 : f32 to vector<8x32xf32>
    %67 = arith.mulf %66, %63 : vector<8x32xf32>
    %68 = arith.select %65, %63, %67 : vector<8x32xi1>, vector<8x32xf32>
    %cst_34 = arith.constant dense<0.000000e+00> : vector<8x32xf32>
    %69 = tpu.matmul %68, %11, %cst_34 {dimension_numbers = #tpu.dot_dimension_numbers<[1], [0], [0], [1], [0, 0, 1, 1], [], []>} : vector<8x32xf32>, vector<32x32xf32>, vector<8x32xf32> -> vector<8x32xf32>
    %cst_35 = arith.constant dense<0.000000e+00> : vector<1x32xf32>
    %70 = tpu.matmul %2, %69, %cst_35 {dimension_numbers = #tpu.dot_dimension_numbers<[1], [0], [0], [1], [0, 0, 1, 1], [], []>} : vector<1x8xf32>, vector<8x32xf32>, vector<1x32xf32> -> vector<1x32xf32>
    %71 = arith.mulf %69, %69 : vector<8x32xf32>
    %cst_36 = arith.constant dense<0.000000e+00> : vector<1x32xf32>
    %72 = tpu.matmul %2, %71, %cst_36 {dimension_numbers = #tpu.dot_dimension_numbers<[1], [0], [0], [1], [0, 0, 1, 1], [], []>} : vector<1x8xf32>, vector<8x32xf32>, vector<1x32xf32> -> vector<1x32xf32>
    %cst_37 = arith.constant 1.250000e-01 : f32
    %73 = vector.broadcast %cst_37 : f32 to vector<1x32xf32>
    %74 = arith.mulf %70, %73 : vector<1x32xf32>
    %cst_38 = arith.constant 1.250000e-01 : f32
    %75 = vector.broadcast %cst_38 : f32 to vector<1x32xf32>
    %76 = arith.mulf %72, %75 : vector<1x32xf32>
    %77 = arith.mulf %74, %74 : vector<1x32xf32>
    %78 = arith.subf %76, %77 : vector<1x32xf32>
    %79 = vector.broadcast %74 : vector<1x32xf32> to vector<8x32xf32>
    %80 = arith.subf %69, %79 : vector<8x32xf32>
    %cst_39 = arith.constant 9.99999974E-6 : f32
    %81 = vector.broadcast %cst_39 : f32 to vector<1x32xf32>
    %82 = arith.addf %78, %81 : vector<1x32xf32>
    %83 = math.rsqrt %82 : vector<1x32xf32>
    %84 = vector.broadcast %83 : vector<1x32xf32> to vector<8x32xf32>
    %85 = arith.mulf %80, %84 : vector<8x32xf32>
    %86 = vector.broadcast %7 : vector<1x32xf32> to vector<8x32xf32>
    %87 = arith.mulf %85, %86 : vector<8x32xf32>
    %88 = vector.broadcast %8 : vector<1x32xf32> to vector<8x32xf32>
    %89 = arith.addf %87, %88 : vector<8x32xf32>
    %cst_40 = arith.constant 0.000000e+00 : f32
    %90 = vector.broadcast %cst_40 : f32 to vector<8x32xf32>
    %91 = arith.cmpf oge, %89, %90 : vector<8x32xf32>
    %92 = vector.broadcast %15 : f32 to vector<8x32xf32>
    %93 = arith.mulf %92, %89 : vector<8x32xf32>
    %94 = arith.select %91, %89, %93 : vector<8x32xi1>, vector<8x32xf32>
    %cst_41 = arith.constant -1.000000e+03 : f32
    %cst_42 = arith.constant 1.000000e+03 : f32
    %95 = vector.broadcast %cst_41 : f32 to vector<8x32xf32>
    %96 = arith.maximumf %95, %94 : vector<8x32xf32>
    %97 = vector.broadcast %cst_42 : f32 to vector<8x32xf32>
    %98 = arith.minimumf %97, %96 : vector<8x32xf32>
    %cst_43 = arith.constant dense<0.000000e+00> : vector<8x384xf32>
    %99 = tpu.matmul %98, %12, %cst_43 {dimension_numbers = #tpu.dot_dimension_numbers<[1], [0], [0], [1], [0, 0, 1, 1], [], []>} : vector<8x32xf32>, vector<32x384xf32>, vector<8x384xf32> -> vector<8x384xf32>
    %100 = vector.broadcast %9 : vector<1x384xf32> to vector<8x384xf32>
    %101 = arith.addf %99, %100 : vector<8x384xf32>
    %102 = vector.extract_strided_slice %101 {offsets = [0, 0], sizes = [8, 8], strides = [1, 1]} : vector<8x384xf32> to vector<8x8xf32>
    %103 = vector.extract_strided_slice %101 {offsets = [0, 128], sizes = [8, 8], strides = [1, 1]} : vector<8x384xf32> to vector<8x8xf32>
    %cst_44 = arith.constant -3.000000e+01 : f32
    %cst_45 = arith.constant 3.000000e+01 : f32
    %104 = vector.broadcast %cst_44 : f32 to vector<8x8xf32>
    %105 = arith.maximumf %104, %103 : vector<8x8xf32>
    %106 = vector.broadcast %cst_45 : f32 to vector<8x8xf32>
    %107 = arith.minimumf %106, %105 : vector<8x8xf32>
    %108 = vector.extract_strided_slice %101 {offsets = [0, 256], sizes = [8, 8], strides = [1, 1]} : vector<8x384xf32> to vector<8x8xf32>
    %cst_46 = arith.constant 0.00999999977 : f32
    %cst_47 = arith.constant 1.000000e+02 : f32
    %109 = vector.broadcast %cst_46 : f32 to vector<8x8xf32>
    %110 = arith.maximumf %109, %108 : vector<8x8xf32>
    %111 = vector.broadcast %cst_47 : f32 to vector<8x8xf32>
    %112 = arith.minimumf %111, %110 : vector<8x8xf32>
    %cst_48 = arith.constant dense<0xFF800000> : vector<8xf32>
    %113 = vector.multi_reduction <maximumf>, %102, %cst_48 [1] : vector<8x8xf32> to vector<8xf32>
    %114 = vector.shape_cast %113 : vector<8xf32> to vector<8x1xf32>
    %115 = vector.broadcast %114 : vector<8x1xf32> to vector<8x8xf32>
    %116 = arith.subf %102, %115 : vector<8x8xf32>
    %117 = math.exp %116 : vector<8x8xf32>
    %cst_49 = arith.constant dense<0.000000e+00> : vector<8xf32>
    %118 = vector.multi_reduction <add>, %117, %cst_49 [1] : vector<8x8xf32> to vector<8xf32>
    %119 = vector.shape_cast %118 : vector<8xf32> to vector<8x1xf32>
    %120 = vector.broadcast %119 : vector<8x1xf32> to vector<8x8xf32>
    %121 = arith.divf %117, %120 : vector<8x8xf32>
    %cst_50 = arith.constant 0.000000e+00 : f32
    %122 = vector.broadcast %cst_50 : f32 to vector<8x8xf32>
    %123 = arith.maximumf %112, %122 : vector<8x8xf32>
    %124 = vector.broadcast %cst_50 : f32 to vector<8x8xf32>
    %125 = arith.subf %112, %124 : vector<8x8xf32>
    %126 = arith.cmpf one, %125, %125 : vector<8x8xf32>
    %127 = vector.broadcast %cst_50 : f32 to vector<8x8xf32>
    %128 = arith.addf %112, %127 : vector<8x8xf32>
    %129 = math.absf %125 : vector<8x8xf32>
    %cst_51 = arith.constant 0.000000e+00 : f32
    %130 = vector.broadcast %cst_51 : f32 to vector<8x8xf32>
    %131 = arith.subf %130, %129 : vector<8x8xf32>
    %132 = math.exp %131 : vector<8x8xf32>
    %133 = math.log1p %132 : vector<8x8xf32>
    %134 = arith.addf %123, %133 : vector<8x8xf32>
    %135 = arith.select %126, %128, %134 : vector<8x8xi1>, vector<8x8xf32>
    %136 = math.exp %1 : vector<8x1xf32>
    %cst_52 = arith.constant 1.000000e+00 : f32
    %137 = vector.broadcast %cst_52 : f32 to vector<8x1xf32>
    %138 = arith.subf %136, %137 : vector<8x1xf32>
    %cst_53 = arith.constant 9.99999997E-7 : f32
    %139 = vector.broadcast %cst_53 : f32 to vector<8x1xf32>
    %140 = arith.addf %138, %139 : vector<8x1xf32>
    %141 = math.log %140 : vector<8x1xf32>
    %142 = vector.broadcast %141 : vector<8x1xf32> to vector<8x8xf32>
    %143 = arith.subf %142, %107 : vector<8x8xf32>
    %144 = arith.divf %143, %135 : vector<8x8xf32>
    %cst_54 = arith.constant 0.707106769 : f32
    %145 = vector.broadcast %cst_54 : f32 to vector<8x8xf32>
    %146 = arith.mulf %144, %145 : vector<8x8xf32>
    %147 = math.erf %146 : vector<8x8xf32>
    %cst_55 = arith.constant 1.000000e+00 : f32
    %148 = vector.broadcast %cst_55 : f32 to vector<8x8xf32>
    %149 = arith.addf %148, %147 : vector<8x8xf32>
    %cst_56 = arith.constant 5.000000e-01 : f32
    %150 = vector.broadcast %cst_56 : f32 to vector<8x8xf32>
    %151 = arith.mulf %150, %149 : vector<8x8xf32>
    %152 = arith.mulf %121, %151 : vector<8x8xf32>
    %cst_57 = arith.constant dense<0.000000e+00> : vector<8xf32>
    %153 = vector.multi_reduction <add>, %152, %cst_57 [1] : vector<8x8xf32> to vector<8xf32>
    %154 = vector.shape_cast %153 : vector<8xf32> to vector<8x1xf32>
    %cst_58 = arith.constant 1.000000e+00 : f32
    %155 = vector.broadcast %cst_58 : f32 to vector<8x1xf32>
    %156 = arith.subf %155, %154 : vector<8x1xf32>
    %cst_59 = arith.constant -5.000000e-01 : f32
    %157 = vector.broadcast %cst_59 : f32 to vector<8x8xf32>
    %158 = arith.mulf %157, %144 : vector<8x8xf32>
    %159 = arith.mulf %158, %144 : vector<8x8xf32>
    %160 = math.log %135 : vector<8x8xf32>
    %161 = arith.subf %159, %160 : vector<8x8xf32>
    %cst_60 = arith.constant 0.918938517 : f32
    %162 = vector.broadcast %cst_60 : f32 to vector<8x8xf32>
    %163 = arith.subf %161, %162 : vector<8x8xf32>
    %cst_61 = arith.constant dense<0xFF800000> : vector<8xf32>
    %164 = vector.multi_reduction <maximumf>, %163, %cst_61 [1] : vector<8x8xf32> to vector<8xf32>
    %165 = vector.shape_cast %164 : vector<8xf32> to vector<8x1xf32>
    %166 = vector.broadcast %165 : vector<8x1xf32> to vector<8x8xf32>
    %167 = arith.subf %163, %166 : vector<8x8xf32>
    %168 = math.exp %167 : vector<8x8xf32>
    %169 = arith.mulf %121, %168 : vector<8x8xf32>
    %cst_62 = arith.constant dense<0.000000e+00> : vector<8xf32>
    %170 = vector.multi_reduction <add>, %169, %cst_62 [1] : vector<8x8xf32> to vector<8xf32>
    %171 = vector.shape_cast %170 : vector<8xf32> to vector<8x1xf32>
    %cst_63 = arith.constant 9.99999997E-7 : f32
    %172 = vector.broadcast %cst_63 : f32 to vector<8x1xf32>
    %173 = arith.addf %171, %172 : vector<8x1xf32>
    %174 = math.log %173 : vector<8x1xf32>
    %175 = arith.addf %174, %165 : vector<8x1xf32>
    %176 = arith.subf %1, %141 : vector<8x1xf32>
    %177 = arith.addf %175, %176 : vector<8x1xf32>
    %178 = math.exp %177 : vector<8x1xf32>
    %c0_64 = arith.constant 0 : index
    %c0_65 = arith.constant 0 : index
    %179 = vector.load %arg6[%c0_64, %c0_65] : memref<8x3xf32, #tpu.memory_space<vmem>>, vector<8x1xf32>
    tpu.vector_store %arg6[%c0_64, %c0_65], %156 {strides = array<i32>} : memref<8x3xf32, #tpu.memory_space<vmem>>, vector<8x1xf32>,
    %cst_66 = arith.constant 9.99999997E-7 : f32
    %180 = vector.broadcast %cst_66 : f32 to vector<8x1xf32>
    %181 = arith.addf %156, %180 : vector<8x1xf32>
    %182 = math.log %181 : vector<8x1xf32>
    %cst_67 = arith.constant 0.000000e+00 : f32
    %183 = vector.broadcast %cst_67 : f32 to vector<8x1xf32>
    %184 = arith.subf %183, %182 : vector<8x1xf32>
    %c0_68 = arith.constant 0 : index
    %c1_69 = arith.constant 1 : index
    %185 = vector.load %arg6[%c0_68, %c1_69] : memref<8x3xf32, #tpu.memory_space<vmem>>, vector<8x1xf32>
    tpu.vector_store %arg6[%c0_68, %c1_69], %184 {strides = array<i32>} : memref<8x3xf32, #tpu.memory_space<vmem>>, vector<8x1xf32>,
    %186 = arith.divf %178, %156 : vector<8x1xf32>
    %c0_70 = arith.constant 0 : index
    %c2_71 = arith.constant 2 : index
    %187 = vector.load %arg6[%c0_70, %c2_71] : memref<8x3xf32, #tpu.memory_space<vmem>>, vector<8x1xf32>
    tpu.vector_store %arg6[%c0_70, %c2_71], %186 {strides = array<i32>} : memref<8x3xf32, #tpu.memory_space<vmem>>, vector<8x1xf32>,
    return
  }
}

</mosaic_0001>

<llo_original>
// kernel: tpu_custom_call.1
$region0: #{tpu_custom_call.1}
  #allocation0 [shape = 'u32[]', space=smem, size = 0x4, offset = 0x4, fixed_abs, tag = 'smem constant byte address 0x4 - core index']
  #allocation1 [shape = 'u32[144,128]{1,0:T(1,128)}', space=vmem, size = 0x12000, scoped, tag = 'internal scratch']
  %s0 = inlined_call_operand.hbm [shape: f32[8,16], index: 0, kind: input, shape index: {}]
  %s1 = inlined_call_operand.vmem [shape: f32[8,1], index: 1, kind: input, shape index: {}]
  %s2 = inlined_call_operand.vmem [shape: f32[16,32], index: 2, kind: input, shape index: {}]
  %s3 = inlined_call_operand.hbm [shape: f32[32,640], index: 3, kind: input, shape index: {}]
  %s4 = inlined_call_operand.hbm [shape: f32[1,1152], index: 4, kind: input, shape index: {}]
  %s5 = inlined_call_operand.vmem [shape: f32[3], index: 5, kind: input, shape index: {}]
  %s6 = inlined_call_operand.vmem [shape: f32[8,3], index: 6, kind: output, shape index: {}]
  %s7 = sld [smem:[#allocation0]]
  $region50: #{tpu_custom_call.1} parent=0
    _
  %s9 = ssub.s32 1, %s7
  %s10 = scalar_select 0, %s9, %s7
  $region1: #{tpu_custom_call.1} parent=0
    #allocation2 [shape = 'u8[4096]{0}', space=vmem, size = 0x1000, scoped, tag = 'input window, operand 0, single buffered']
    #allocation3 [shape = 's32[1]{0}', space=sflag, size = 0x4, scoped, tag = 'scoped memory for tpu_custom_call.1']
    #allocation4 [shape = 's32[1]{0}', space=sflag, size = 0x4, scoped, tag = 'scoped memory for tpu_custom_call.1']
    #allocation5 [shape = 'u8[81920]{0}', space=vmem, size = 0x14000, scoped, tag = 'input window, operand 3, single buffered']
    #allocation6 [shape = 's32[1]{0}', space=sflag, size = 0x4, scoped, tag = 'scoped memory for tpu_custom_call.1']
    #allocation7 [shape = 'u8[4608]{0}', space=vmem, size = 0x1400, scoped, tag = 'input window, operand 4, single buffered']
    #allocation8 [shape = 'u8[512]{0}', space=smem, size = 0x200, scoped, tag = 'input window, operand 5, single buffered']
    %11 = vsyncpa [#allocation3], 0
    %12 = vsyncpa [#allocation6], 0
    %13 = vsyncpa [#allocation4], 0
    // Predicated region
    $region2: #{tpu_custom_call.1} parent=1 // pred_check
      _
    $region3: #{tpu_custom_call.1} parent=1 // pred_check_branch
      %15 = sbr.rel (0) target = $region5
    $region4: #{tpu_custom_call.1} parent=1 // pred_region
      %s17 = ssub.s32 128, 128
      %18 = vsyncadd [#allocation3], %s17
      %s20 = sshll.u32 [#allocation2], 4
      %s21 = int_to_ptr.vmem [resolvable:$true] %s20
      %23 = dma.hbm_to_vmem [thread:$0]  %s0, 128, %s21, [#allocation3]
    $region5: #{tpu_custom_call.1} parent=1 // pred_fallthru
      _
    // Predicated region
    $region6: #{tpu_custom_call.1} parent=1 // pred_check
      _
    $region7: #{tpu_custom_call.1} parent=1 // pred_check_branch
      %25 = sbr.rel (0) target = $region9
    $region8: #{tpu_custom_call.1} parent=1 // pred_region
      _
    $region9: #{tpu_custom_call.1} parent=1 // pred_fallthru
      _
    // Predicated region
    $region10: #{tpu_custom_call.1} parent=1 // pred_check
      _
    $region11: #{tpu_custom_call.1} parent=1 // pred_check_branch
      %27 = sbr.rel (0) target = $region13
    $region12: #{tpu_custom_call.1} parent=1 // pred_region
      _
    $region13: #{tpu_custom_call.1} parent=1 // pred_fallthru
      _
    // Predicated region
    $region14: #{tpu_custom_call.1} parent=1 // pred_check
      _
    $region15: #{tpu_custom_call.1} parent=1 // pred_check_branch
      %29 = sbr.rel (0) target = $region17
    $region16: #{tpu_custom_call.1} parent=1 // pred_region
      %s31 = ssub.s32 2560, 2560
      %32 = vsyncadd [#allocation6], %s31
      %s33 = sshll.u32 [#allocation5], 4
      %s34 = int_to_ptr.vmem [resolvable:$true] %s33
      %39 = dma.hbm_to_vmem [thread:$0]  %s3, 2560, %s34, [#allocation6], 640, 640, 40
    $region17: #{tpu_custom_call.1} parent=1 // pred_fallthru
      _
    // Predicated region
    $region18: #{tpu_custom_call.1} parent=1 // pred_check
      _
    $region19: #{tpu_custom_call.1} parent=1 // pred_check_branch
      %41 = sbr.rel (0) target = $region21
    $region20: #{tpu_custom_call.1} parent=1 // pred_region
      %s43 = ssub.s32 144, 144
      %44 = vsyncadd [#allocation6], %s43
      %s46 = sshll.u32 [#allocation7], 4
      %s47 = int_to_ptr.vmem [resolvable:$true] %s46
      %49 = dma.hbm_to_vmem [thread:$0]  %s4, 144, %s47, [#allocation6]
    $region21: #{tpu_custom_call.1} parent=1 // pred_fallthru
      _
    // Predicated region
    $region22: #{tpu_custom_call.1} parent=1 // pred_check
      _
    $region23: #{tpu_custom_call.1} parent=1 // pred_check_branch
      %51 = sbr.rel (0) target = $region25
    $region24: #{tpu_custom_call.1} parent=1 // pred_region
      %s53 = ssub.s32 16, 16
      %54 = vsyncadd [#allocation4], %s53
      %s56 = sshll.u32 %s5, 4
      %s57 = int_to_ptr.vmem [resolvable:$true] %s56
      %59 = dma.vmem_to_smem %s57, 16, [#allocation8], [#allocation4]
    $region25: #{tpu_custom_call.1} parent=1 // pred_fallthru
      _
    // Predicated region
    $region26: #{tpu_custom_call.1} parent=1 // pred_check
      _
    $region27: #{tpu_custom_call.1} parent=1 // pred_check_branch
      %61 = sbr.rel (0) target = $region29
    $region28: #{tpu_custom_call.1} parent=1 // pred_region
      %62 = dma.done [#allocation3], 128
    $region29: #{tpu_custom_call.1} parent=1 // pred_fallthru
      _
    // Predicated region
    $region30: #{tpu_custom_call.1} parent=1 // pred_check
      _
    $region31: #{tpu_custom_call.1} parent=1 // pred_check_branch
      %64 = sbr.rel (0) target = $region33
    $region32: #{tpu_custom_call.1} parent=1 // pred_region
      %65 = dma.done [#allocation6], 2560
    $region33: #{tpu_custom_call.1} parent=1 // pred_fallthru
      _
    // Predicated region
    $region34: #{tpu_custom_call.1} parent=1 // pred_check
      _
    $region35: #{tpu_custom_call.1} parent=1 // pred_check_branch
      %67 = sbr.rel (0) target = $region37
    $region36: #{tpu_custom_call.1} parent=1 // pred_region
      %68 = dma.done [#allocation6], 144
    $region37: #{tpu_custom_call.1} parent=1 // pred_fallthru
      _
    // Predicated region
    $region38: #{tpu_custom_call.1} parent=1 // pred_check
      _
    $region39: #{tpu_custom_call.1} parent=1 // pred_check_branch
      %70 = sbr.rel (0) target = $region41
    $region40: #{tpu_custom_call.1} parent=1 // pred_region
      %71 = dma.done [#allocation4], 16
    $region41: #{tpu_custom_call.1} parent=1 // pred_fallthru
      _
    %72 = sfence
    %v73 = vld [vmem:[#allocation2] sm:$0xff]
    %v74 = vld [vmem:[%s1] sm:$0xff]
    %v75 = vld [vmem:[#allocation7] sm:$0x1]
    %v76 = vld [vmem:[#allocation7 + $0x1] sm:$0x1]
    %v77 = vld [vmem:[#allocation7 + $0x2] sm:$0x1]
    %v78 = vld [vmem:[#allocation7 + $0x3] sm:$0x1]
    %v79 = vld [vmem:[#allocation7 + $0x4] sm:$0x1]
    %v80 = vld [vmem:[#allocation7 + $0x5] sm:$0x1]
    %v81 = vld [vmem:[#allocation7 + $0x6] sm:$0x7]
    %v82 = vld [vmem:[#allocation5] sm:$0xff]
    %v83 = vld [vmem:[#allocation5 + $0x28] sm:$0xff]
    %v84 = vld [vmem:[#allocation5 + $0x50] sm:$0xff]
    %v85 = vld [vmem:[#allocation5 + $0x78] sm:$0xff]
    %v86 = vld [vmem:[#allocation5 + $0x8] sm:$0xff]
    %v87 = vld [vmem:[#allocation5 + $0x30] sm:$0xff]
    %v88 = vld [vmem:[#allocation5 + $0x58] sm:$0xff]
    %v89 = vld [vmem:[#allocation5 + $0x80] sm:$0xff]
    %v90 = vld [vmem:[#allocation5 + $0x10] sm:$0xff]
    %v91 = vld [vmem:[#allocation5 + $0x18] sm:$0xff]
    %v92 = vld [vmem:[#allocation5 + $0x20] sm:$0xff]
    %v93 = vld [vmem:[#allocation5 + $0x38] sm:$0xff]
    %v94 = vld [vmem:[#allocation5 + $0x40] sm:$0xff]
    %v95 = vld [vmem:[#allocation5 + $0x48] sm:$0xff]
    %v96 = vld [vmem:[#allocation5 + $0x60] sm:$0xff]
    %v97 = vld [vmem:[#allocation5 + $0x68] sm:$0xff]
    %v98 = vld [vmem:[#allocation5 + $0x70] sm:$0xff]
    %v99 = vld [vmem:[#allocation5 + $0x88] sm:$0xff]
    %v100 = vld [vmem:[#allocation5 + $0x90] sm:$0xff]
    %v101 = vld [vmem:[#allocation5 + $0x98] sm:$0xff]
    %s102 = sld [smem:[#allocation8]]
    %s103 = sld [smem:[#allocation8 + $0x1]]
    %s104 = sld [smem:[#allocation8 + $0x2]]
    %v105 = vld [vmem:[%s2] sm:$0xff]
    %v106 = vld [vmem:[%s2 + $0x8] sm:$0xff]
    %vm107 = vcmask 130048
    %v109 = vsel %vm107, %v73, 0
    %111 = vmatprep.subr.mxu0 0.0
    %112 = vmatpush1.msra.mxu0 %v105
    %113 = vmatprep.subr.mxu0 0.0
    %114 = vmatpush1.msra.mxu0 %v106
    %115 = vmatprep.subr.mxu0 0.0
    %116 = vmatpush1.msra.mxu0 0.0
    %117 = vmatprep.subr.mxu0 0.0
    %118 = vmatpush1.msra.mxu0 0.0
    %119 = vmatprep.subr.mxu0 0.0
    %120 = vmatpush1.msra.mxu0 0.0
    %121 = vmatprep.subr.mxu0 0.0
    %122 = vmatpush1.msra.mxu0 0.0
    %123 = vmatprep.subr.mxu0 0.0
    %124 = vmatpush1.msra.mxu0 0.0
    %125 = vmatprep.subr.mxu0 0.0
    %126 = vmatpush1.msra.mxu0 0.0
    %127 = vmatprep.subr.mxu0 0.0
    %128 = vmatpush1.msra.mxu0 0.0
    %129 = vmatprep.subr.mxu0 0.0
    %130 = vmatpush1.msra.mxu0 0.0
    %131 = vmatprep.subr.mxu0 0.0
    %132 = vmatpush1.msra.mxu0 0.0
    %133 = vmatprep.subr.mxu0 0.0
    %134 = vmatpush1.msra.mxu0 0.0
    %135 = vmatprep.subr.mxu0 0.0
    %136 = vmatpush1.msra.mxu0 0.0
    %137 = vmatprep.subr.mxu0 0.0
    %138 = vmatpush1.msra.mxu0 0.0
    %139 = vmatprep.subr.mxu0 0.0
    %140 = vmatpush1.msra.mxu0 0.0
    %141 = vmatprep.subr.mxu0 0.0
    %142 = vmatpush1.msra.mxu0 0.0
    %143 = vmatprep.subr.mxu0 0.0
    %144 = vmatpush1.msra.mxu0 0.0
    %145 = vmatprep.subr.mxu0 0.0
    %146 = vmatpush1.msra.mxu0 0.0
    %147 = vmatprep.subr.mxu0 0.0
    %148 = vmatpush1.msra.mxu0 0.0
    %149 = vmatprep.subr.mxu0 0.0
    %150 = vmatpush1.msra.mxu0 0.0
    %151 = vmatprep.subr.mxu0 0.0
    %152 = vmatpush1.msra.mxu0 0.0
    %153 = vmatprep.subr.mxu0 0.0
    %154 = vmatpush1.msra.mxu0 0.0
    %155 = vmatprep.subr.mxu0 0.0
    %156 = vmatpush1.msra.mxu0 0.0
    %157 = vmatprep.subr.mxu0 0.0
    %158 = vmatpush1.msra.mxu0 0.0
    %159 = vmatprep.subr.mxu0 0.0
    %160 = vmatpush1.msra.mxu0 0.0
    %161 = vmatprep.subr.mxu0 0.0
    %162 = vmatpush1.msra.mxu0 0.0
    %163 = vmatprep.subr.mxu0 0.0
    %164 = vmatpush1.msra.mxu0 0.0
    %165 = vmatprep.subr.mxu0 0.0
    %166 = vmatpush1.msra.mxu0 0.0
    %167 = vmatprep.subr.mxu0 0.0
    %168 = vmatpush1.msra.mxu0 0.0
    %169 = vmatprep.subr.mxu0 0.0
    %170 = vmatpush1.msra.mxu0 0.0
    %171 = vmatprep.subr.mxu0 0.0
    %172 = vmatpush1.msra.mxu0 0.0
    %173 = vmatprep.subr.mxu0 0.0
    %174 = vmatpush1.msra.mxu0 0.0
    %175 = vmatprep.mubr.f32.mxu0 0.0
    %176 = vmatmul.mubr.f32.gmra.mrb[0].mxu0 %v109
    %v177 = vpop.f32.mrb[0].mxu0
    %v178 = vadd.f32 0.0, %v177
    %v179 = vpop.f32.mrb[0].mxu0
    %180 = vdwg.mxu0
    %vm181 = vcmask 64512
    %v183 = vsel %vm181, 1.0, 0
    %185 = vmatprep.subr.mxu0 0.0
    %186 = vmatpush1.msra.mxu0 %v178
    %187 = vmatprep.subr.mxu0 0.0
    %188 = vmatpush1.msra.mxu0 0.0
    %189 = vmatprep.subr.mxu0 0.0
    %190 = vmatpush1.msra.mxu0 0.0
    %191 = vmatprep.subr.mxu0 0.0
    %192 = vmatpush1.msra.mxu0 0.0
    %193 = vmatprep.subr.mxu0 0.0
    %194 = vmatpush1.msra.mxu0 0.0
    %195 = vmatprep.subr.mxu0 0.0
    %196 = vmatpush1.msra.mxu0 0.0
    %197 = vmatprep.subr.mxu0 0.0
    %198 = vmatpush1.msra.mxu0 0.0
    %199 = vmatprep.subr.mxu0 0.0
    %200 = vmatpush1.msra.mxu0 0.0
    %201 = vmatprep.subr.mxu0 0.0
    %202 = vmatpush1.msra.mxu0 0.0
    %203 = vmatprep.subr.mxu0 0.0
    %204 = vmatpush1.msra.mxu0 0.0
    %205 = vmatprep.subr.mxu0 0.0
    %206 = vmatpush1.msra.mxu0 0.0
    %207 = vmatprep.subr.mxu0 0.0
    %208 = vmatpush1.msra.mxu0 0.0
    %209 = vmatprep.subr.mxu0 0.0
    %210 = vmatpush1.msra.mxu0 0.0
    %211 = vmatprep.subr.mxu0 0.0
    %212 = vmatpush1.msra.mxu0 0.0
    %213 = vmatprep.subr.mxu0 0.0
    %214 = vmatpush1.msra.mxu0 0.0
    %215 = vmatprep.subr.mxu0 0.0
    %216 = vmatpush1.msra.mxu0 0.0
    %217 = vmatprep.subr.mxu0 0.0
    %218 = vmatpush1.msra.mxu0 0.0
    %219 = vmatprep.subr.mxu0 0.0
    %220 = vmatpush1.msra.mxu0 0.0
    %221 = vmatprep.subr.mxu0 0.0
    %222 = vmatpush1.msra.mxu0 0.0
    %223 = vmatprep.subr.mxu0 0.0
    %224 = vmatpush1.msra.mxu0 0.0
    %225 = vmatprep.subr.mxu0 0.0
    %226 = vmatpush1.msra.mxu0 0.0
    %227 = vmatprep.subr.mxu0 0.0
    %228 = vmatpush1.msra.mxu0 0.0
    %229 = vmatprep.subr.mxu0 0.0
    %230 = vmatpush1.msra.mxu0 0.0
    %231 = vmatprep.subr.mxu0 0.0
    %232 = vmatpush1.msra.mxu0 0.0
    %233 = vmatprep.subr.mxu0 0.0
    %234 = vmatpush1.msra.mxu0 0.0
    %235 = vmatprep.subr.mxu0 0.0
    %236 = vmatpush1.msra.mxu0 0.0
    %237 = vmatprep.subr.mxu0 0.0
    %238 = vmatpush1.msra.mxu0 0.0
    %239 = vmatprep.subr.mxu0 0.0
    %240 = vmatpush1.msra.mxu0 0.0
    %241 = vmatprep.subr.mxu0 0.0
    %242 = vmatpush1.msra.mxu0 0.0
    %243 = vmatprep.subr.mxu0 0.0
    %244 = vmatpush1.msra.mxu0 0.0
    %245 = vmatprep.subr.mxu0 0.0
    %246 = vmatpush1.msra.mxu0 0.0
    %247 = vmatprep.subr.mxu0 0.0
    %248 = vmatpush1.msra.mxu0 0.0
    %249 = vmatprep.mubr.f32.mxu0 0.0
    %250 = vmatmul.mubr.f32.gmra.mrb[0].mxu0 %v183
    %v251 = vpop.f32.mrb[0].mxu0
    %v252 = vadd.f32 0.0, %v251
    %v253 = vpop.f32.mrb[0].mxu0
    %254 = vdwg.mxu0
    %v255 = vmul.f32 %v178, %v178
    %256 = vmatprep.subr.mxu0 0.0
    %257 = vmatpush1.msra.mxu0 %v255
    %258 = vmatprep.subr.mxu0 0.0
    %259 = vmatpush1.msra.mxu0 0.0
    %260 = vmatprep.subr.mxu0 0.0
    %261 = vmatpush1.msra.mxu0 0.0
    %262 = vmatprep.subr.mxu0 0.0
    %263 = vmatpush1.msra.mxu0 0.0
    %264 = vmatprep.subr.mxu0 0.0
    %265 = vmatpush1.msra.mxu0 0.0
    %266 = vmatprep.subr.mxu0 0.0
    %267 = vmatpush1.msra.mxu0 0.0
    %268 = vmatprep.subr.mxu0 0.0
    %269 = vmatpush1.msra.mxu0 0.0
    %270 = vmatprep.subr.mxu0 0.0
    %271 = vmatpush1.msra.mxu0 0.0
    %272 = vmatprep.subr.mxu0 0.0
    %273 = vmatpush1.msra.mxu0 0.0
    %274 = vmatprep.subr.mxu0 0.0
    %275 = vmatpush1.msra.mxu0 0.0
    %276 = vmatprep.subr.mxu0 0.0
    %277 = vmatpush1.msra.mxu0 0.0
    %278 = vmatprep.subr.mxu0 0.0
    %279 = vmatpush1.msra.mxu0 0.0
    %280 = vmatprep.subr.mxu0 0.0
    %281 = vmatpush1.msra.mxu0 0.0
    %282 = vmatprep.subr.mxu0 0.0
    %283 = vmatpush1.msra.mxu0 0.0
    %284 = vmatprep.subr.mxu0 0.0
    %285 = vmatpush1.msra.mxu0 0.0
    %286 = vmatprep.subr.mxu0 0.0
    %287 = vmatpush1.msra.mxu0 0.0
    %288 = vmatprep.subr.mxu0 0.0
    %289 = vmatpush1.msra.mxu0 0.0
    %290 = vmatprep.subr.mxu0 0.0
    %291 = vmatpush1.msra.mxu0 0.0
    %292 = vmatprep.subr.mxu0 0.0
    %293 = vmatpush1.msra.mxu0 0.0
    %294 = vmatprep.subr.mxu0 0.0
    %295 = vmatpush1.msra.mxu0 0.0
    %296 = vmatprep.subr.mxu0 0.0
    %297 = vmatpush1.msra.mxu0 0.0
    %298 = vmatprep.subr.mxu0 0.0
    %299 = vmatpush1.msra.mxu0 0.0
    %300 = vmatprep.subr.mxu0 0.0
    %301 = vmatpush1.msra.mxu0 0.0
    %302 = vmatprep.subr.mxu0 0.0
    %303 = vmatpush1.msra.mxu0 0.0
    %304 = vmatprep.subr.mxu0 0.0
    %305 = vmatpush1.msra.mxu0 0.0
    %306 = vmatprep.subr.mxu0 0.0
    %307 = vmatpush1.msra.mxu0 0.0
    %308 = vmatprep.subr.mxu0 0.0
    %309 = vmatpush1.msra.mxu0 0.0
    %310 = vmatprep.subr.mxu0 0.0
    %311 = vmatpush1.msra.mxu0 0.0
    %312 = vmatprep.subr.mxu0 0.0
    %313 = vmatpush1.msra.mxu0 0.0
    %314 = vmatprep.subr.mxu0 0.0
    %315 = vmatpush1.msra.mxu0 0.0
    %316 = vmatprep.subr.mxu0 0.0
    %317 = vmatpush1.msra.mxu0 0.0
    %318 = vmatprep.subr.mxu0 0.0
    %319 = vmatpush1.msra.mxu0 0.0
    %320 = vmatprep.mubr.f32.mxu0 0.0
    %321 = vmatmul.mubr.f32.gmra.mrb[0].mxu0 %v183
    %v322 = vpop.f32.mrb[0].mxu0
    %v323 = vadd.f32 0.0, %v322
    %v324 = vpop.f32.mrb[0].mxu0
    %325 = vdwg.mxu0
    %v326 = vmul.f32 %v252, 0.125
    %v327 = vmul.f32 %v323, 0.125
    %v328 = vmul.f32 %v326, %v326
    %v329 = vsub.f32 %v327, %v328
    %v330 = vlaneseq
    %v331 = vshrl.u32 %v330, 7
    %v332 = vsub.s32 0, %v331
    %v333 = vrot.slane %v326, %v332
    %v334 = vsub.f32 %v178, %v333
    %v335 = vadd.f32 %v329, 1e-05
    %v336 = vrsqrt.pop %v335
    %v337 = vlaneseq
    %v338 = vshrl.u32 %v337, 7
    %v339 = vsub.s32 0, %v338
    %v340 = vrot.slane %v336, %v339
    %v341 = vmul.f32 %v334, %v340
    %v343 = vlaneseq
    %v344 = vshrl.u32 %v343, 7
    %v345 = vsub.s32 0, %v344
    %v346 = vrot.slane %v75, %v345
    %v348 = vmul.f32 %v341, %v346
    %v350 = vlaneseq
    %v351 = vshrl.u32 %v350, 7
    %v352 = vsub.s32 0, %v351
    %v353 = vrot.slane %v76, %v352
    %v355 = vadd.f32 %v348, %v353
    %vm356 = vcmp.ge.f32.partialorder %v355, 0.0
    %v357 = vstv %s102
    %v358 = vmul.f32 %v357, %v355
    %v359 = vsel %vm356, %v355, %v358
    %vm360 = vcmask 261120
    %v362 = vsel %vm360, %v359, 0
    %364 = vmatprep.subr.mxu0 0.0
    %365 = vmatpush1.msra.mxu0 %v82
    %366 = vmatprep.subr.mxu0 0.0
    %367 = vmatpush1.msra.mxu0 %v83
    %368 = vmatprep.subr.mxu0 0.0
    %369 = vmatpush1.msra.mxu0 %v84
    %370 = vmatprep.subr.mxu0 0.0
    %371 = vmatpush1.msra.mxu0 %v85
    %372 = vmatprep.subr.mxu0 0.0
    %373 = vmatpush1.msra.mxu0 0.0
    %374 = vmatprep.subr.mxu0 0.0
    %375 = vmatpush1.msra.mxu0 0.0
    %376 = vmatprep.subr.mxu0 0.0
    %377 = vmatpush1.msra.mxu0 0.0
    %378 = vmatprep.subr.mxu0 0.0
    %379 = vmatpush1.msra.mxu0 0.0
    %380 = vmatprep.subr.mxu0 0.0
    %381 = vmatpush1.msra.mxu0 0.0
    %382 = vmatprep.subr.mxu0 0.0
    %383 = vmatpush1.msra.mxu0 0.0
    %384 = vmatprep.subr.mxu0 0.0
    %385 = vmatpush1.msra.mxu0 0.0
    %386 = vmatprep.subr.mxu0 0.0
    %387 = vmatpush1.msra.mxu0 0.0
    %388 = vmatprep.subr.mxu0 0.0
    %389 = vmatpush1.msra.mxu0 0.0
    %390 = vmatprep.subr.mxu0 0.0
    %391 = vmatpush1.msra.mxu0 0.0
    %392 = vmatprep.subr.mxu0 0.0
    %393 = vmatpush1.msra.mxu0 0.0
    %394 = vmatprep.subr.mxu0 0.0
    %395 = vmatpush1.msra.mxu0 0.0
    %396 = vmatprep.subr.mxu0 0.0
    %397 = vmatpush1.msra.mxu0 0.0
    %398 = vmatprep.subr.mxu0 0.0
    %399 = vmatpush1.msra.mxu0 0.0
    %400 = vmatprep.subr.mxu0 0.0
    %401 = vmatpush1.msra.mxu0 0.0
    %402 = vmatprep.subr.mxu0 0.0
    %403 = vmatpush1.msra.mxu0 0.0
    %404 = vmatprep.subr.mxu0 0.0
    %405 = vmatpush1.msra.mxu0 0.0
    %406 = vmatprep.subr.mxu0 0.0
    %407 = vmatpush1.msra.mxu0 0.0
    %408 = vmatprep.subr.mxu0 0.0
    %409 = vmatpush1.msra.mxu0 0.0
    %410 = vmatprep.subr.mxu0 0.0
    %411 = vmatpush1.msra.mxu0 0.0
    %412 = vmatprep.subr.mxu0 0.0
    %413 = vmatpush1.msra.mxu0 0.0
    %414 = vmatprep.subr.mxu0 0.0
    %415 = vmatpush1.msra.mxu0 0.0
    %416 = vmatprep.subr.mxu0 0.0
    %417 = vmatpush1.msra.mxu0 0.0
    %418 = vmatprep.subr.mxu0 0.0
    %419 = vmatpush1.msra.mxu0 0.0
    %420 = vmatprep.subr.mxu0 0.0
    %421 = vmatpush1.msra.mxu0 0.0
    %422 = vmatprep.subr.mxu0 0.0
    %423 = vmatpush1.msra.mxu0 0.0
    %424 = vmatprep.subr.mxu0 0.0
    %425 = vmatpush1.msra.mxu0 0.0
    %426 = vmatprep.subr.mxu0 0.0
    %427 = vmatpush1.msra.mxu0 0.0
    %428 = vmatprep.mubr.f32.mxu0 0.0
    %429 = vmatmul.mubr.f32.gmra.mrb[0].mxu0 %v362
    %v430 = vpop.f32.mrb[0].mxu0
    %v431 = vadd.f32 0.0, %v430
    %v432 = vpop.f32.mrb[0].mxu0
    %433 = vdwg.mxu0
    %434 = vmatprep.subr.mxu0 0.0
    %435 = vmatpush1.msra.mxu0 %v431
    %436 = vmatprep.subr.mxu0 0.0
    %437 = vmatpush1.msra.mxu0 0.0
    %438 = vmatprep.subr.mxu0 0.0
    %439 = vmatpush1.msra.mxu0 0.0
    %440 = vmatprep.subr.mxu0 0.0
    %441 = vmatpush1.msra.mxu0 0.0
    %442 = vmatprep.subr.mxu0 0.0
    %443 = vmatpush1.msra.mxu0 0.0
    %444 = vmatprep.subr.mxu0 0.0
    %445 = vmatpush1.msra.mxu0 0.0
    %446 = vmatprep.subr.mxu0 0.0
    %447 = vmatpush1.msra.mxu0 0.0
    %448 = vmatprep.subr.mxu0 0.0
    %449 = vmatpush1.msra.mxu0 0.0
    %450 = vmatprep.subr.mxu0 0.0
    %451 = vmatpush1.msra.mxu0 0.0
    %452 = vmatprep.subr.mxu0 0.0
    %453 = vmatpush1.msra.mxu0 0.0
    %454 = vmatprep.subr.mxu0 0.0
    %455 = vmatpush1.msra.mxu0 0.0
    %456 = vmatprep.subr.mxu0 0.0
    %457 = vmatpush1.msra.mxu0 0.0
    %458 = vmatprep.subr.mxu0 0.0
    %459 = vmatpush1.msra.mxu0 0.0
    %460 = vmatprep.subr.mxu0 0.0
    %461 = vmatpush1.msra.mxu0 0.0
    %462 = vmatprep.subr.mxu0 0.0
    %463 = vmatpush1.msra.mxu0 0.0
    %464 = vmatprep.subr.mxu0 0.0
    %465 = vmatpush1.msra.mxu0 0.0
    %466 = vmatprep.subr.mxu0 0.0
    %467 = vmatpush1.msra.mxu0 0.0
    %468 = vmatprep.subr.mxu0 0.0
    %469 = vmatpush1.msra.mxu0 0.0
    %470 = vmatprep.subr.mxu0 0.0
    %471 = vmatpush1.msra.mxu0 0.0
    %472 = vmatprep.subr.mxu0 0.0
    %473 = vmatpush1.msra.mxu0 0.0
    %474 = vmatprep.subr.mxu0 0.0
    %475 = vmatpush1.msra.mxu0 0.0
    %476 = vmatprep.subr.mxu0 0.0
    %477 = vmatpush1.msra.mxu0 0.0
    %478 = vmatprep.subr.mxu0 0.0
    %479 = vmatpush1.msra.mxu0 0.0
    %480 = vmatprep.subr.mxu0 0.0
    %481 = vmatpush1.msra.mxu0 0.0
    %482 = vmatprep.subr.mxu0 0.0
    %483 = vmatpush1.msra.mxu0 0.0
    %484 = vmatprep.subr.mxu0 0.0
    %485 = vmatpush1.msra.mxu0 0.0
    %486 = vmatprep.subr.mxu0 0.0
    %487 = vmatpush1.msra.mxu0 0.0
    %488 = vmatprep.subr.mxu0 0.0
    %489 = vmatpush1.msra.mxu0 0.0
    %490 = vmatprep.subr.mxu0 0.0
    %491 = vmatpush1.msra.mxu0 0.0
    %492 = vmatprep.subr.mxu0 0.0
    %493 = vmatpush1.msra.mxu0 0.0
    %494 = vmatprep.subr.mxu0 0.0
    %495 = vmatpush1.msra.mxu0 0.0
    %496 = vmatprep.subr.mxu0 0.0
    %497 = vmatpush1.msra.mxu0 0.0
    %498 = vmatprep.mubr.f32.mxu0 0.0
    %499 = vmatmul.mubr.f32.gmra.mrb[0].mxu0 %v183
    %v500 = vpop.f32.mrb[0].mxu0
    %v501 = vadd.f32 0.0, %v500
    %v502 = vpop.f32.mrb[0].mxu0
    %503 = vdwg.mxu0
    %v504 = vmul.f32 %v431, %v431
    %505 = vmatprep.subr.mxu0 0.0
    %506 = vmatpush1.msra.mxu0 %v504
    %507 = vmatprep.subr.mxu0 0.0
    %508 = vmatpush1.msra.mxu0 0.0
    %509 = vmatprep.subr.mxu0 0.0
    %510 = vmatpush1.msra.mxu0 0.0
    %511 = vmatprep.subr.mxu0 0.0
    %512 = vmatpush1.msra.mxu0 0.0
    %513 = vmatprep.subr.mxu0 0.0
    %514 = vmatpush1.msra.mxu0 0.0
    %515 = vmatprep.subr.mxu0 0.0
    %516 = vmatpush1.msra.mxu0 0.0
    %517 = vmatprep.subr.mxu0 0.0
    %518 = vmatpush1.msra.mxu0 0.0
    %519 = vmatprep.subr.mxu0 0.0
    %520 = vmatpush1.msra.mxu0 0.0
    %521 = vmatprep.subr.mxu0 0.0
    %522 = vmatpush1.msra.mxu0 0.0
    %523 = vmatprep.subr.mxu0 0.0
    %524 = vmatpush1.msra.mxu0 0.0
    %525 = vmatprep.subr.mxu0 0.0
    %526 = vmatpush1.msra.mxu0 0.0
    %527 = vmatprep.subr.mxu0 0.0
    %528 = vmatpush1.msra.mxu0 0.0
    %529 = vmatprep.subr.mxu0 0.0
    %530 = vmatpush1.msra.mxu0 0.0
    %531 = vmatprep.subr.mxu0 0.0
    %532 = vmatpush1.msra.mxu0 0.0
    %533 = vmatprep.subr.mxu0 0.0
    %534 = vmatpush1.msra.mxu0 0.0
    %535 = vmatprep.subr.mxu0 0.0
    %536 = vmatpush1.msra.mxu0 0.0
    %537 = vmatprep.subr.mxu0 0.0
    %538 = vmatpush1.msra.mxu0 0.0
    %539 = vmatprep.subr.mxu0 0.0
    %540 = vmatpush1.msra.mxu0 0.0
    %541 = vmatprep.subr.mxu0 0.0
    %542 = vmatpush1.msra.mxu0 0.0
    %543 = vmatprep.subr.mxu0 0.0
    %544 = vmatpush1.msra.mxu0 0.0
    %545 = vmatprep.subr.mxu0 0.0
    %546 = vmatpush1.msra.mxu0 0.0
    %547 = vmatprep.subr.mxu0 0.0
    %548 = vmatpush1.msra.mxu0 0.0
    %549 = vmatprep.subr.mxu0 0.0
    %550 = vmatpush1.msra.mxu0 0.0
    %551 = vmatprep.subr.mxu0 0.0
    %552 = vmatpush1.msra.mxu0 0.0
    %553 = vmatprep.subr.mxu0 0.0
    %554 = vmatpush1.msra.mxu0 0.0
    %555 = vmatprep.subr.mxu0 0.0
    %556 = vmatpush1.msra.mxu0 0.0
    %557 = vmatprep.subr.mxu0 0.0
    %558 = vmatpush1.msra.mxu0 0.0
    %559 = vmatprep.subr.mxu0 0.0
    %560 = vmatpush1.msra.mxu0 0.0
    %561 = vmatprep.subr.mxu0 0.0
    %562 = vmatpush1.msra.mxu0 0.0
    %563 = vmatprep.subr.mxu0 0.0
    %564 = vmatpush1.msra.mxu0 0.0
    %565 = vmatprep.subr.mxu0 0.0
    %566 = vmatpush1.msra.mxu0 0.0
    %567 = vmatprep.subr.mxu0 0.0
    %568 = vmatpush1.msra.mxu0 0.0
    %569 = vmatprep.mubr.f32.mxu0 0.0
    %570 = vmatmul.mubr.f32.gmra.mrb[0].mxu0 %v183
    %v571 = vpop.f32.mrb[0].mxu0
    %v572 = vadd.f32 0.0, %v571
    %v573 = vpop.f32.mrb[0].mxu0
    %574 = vdwg.mxu0
    %v575 = vmul.f32 %v501, 0.125
    %v576 = vmul.f32 %v572, 0.125
    %v577 = vmul.f32 %v575, %v575
    %v578 = vsub.f32 %v576, %v577
    %v579 = vlaneseq
    %v580 = vshrl.u32 %v579, 7
    %v581 = vsub.s32 0, %v580
    %v582 = vrot.slane %v575, %v581
    %v583 = vsub.f32 %v431, %v582
    %v584 = vadd.f32 %v578, 1e-05
    %v585 = vrsqrt.pop %v584
    %v586 = vlaneseq
    %v587 = vshrl.u32 %v586, 7
    %v588 = vsub.s32 0, %v587
    %v589 = vrot.slane %v585, %v588
    %v590 = vmul.f32 %v583, %v589
    %v592 = vlaneseq
    %v593 = vshrl.u32 %v592, 7
    %v594 = vsub.s32 0, %v593
    %v595 = vrot.slane %v77, %v594
    %v597 = vmul.f32 %v590, %v595
    %v599 = vlaneseq
    %v600 = vshrl.u32 %v599, 7
    %v601 = vsub.s32 0, %v600
    %v602 = vrot.slane %v78, %v601
    %v604 = vadd.f32 %v597, %v602
    %vm605 = vcmp.ge.f32.partialorder %v604, 0.0
    %v606 = vstv %s103
    %v607 = vmul.f32 %v606, %v604
    %v608 = vsel %vm605, %v604, %v607
    %v610 = vsel %vm360, %v608, 0
    %612 = vmatprep.subr.mxu0 0.0
    %613 = vmatpush1.msra.mxu0 %v86
    %614 = vmatprep.subr.mxu0 0.0
    %615 = vmatpush1.msra.mxu0 %v87
    %616 = vmatprep.subr.mxu0 0.0
    %617 = vmatpush1.msra.mxu0 %v88
    %618 = vmatprep.subr.mxu0 0.0
    %619 = vmatpush1.msra.mxu0 %v89
    %620 = vmatprep.subr.mxu0 0.0
    %621 = vmatpush1.msra.mxu0 0.0
    %622 = vmatprep.subr.mxu0 0.0
    %623 = vmatpush1.msra.mxu0 0.0
    %624 = vmatprep.subr.mxu0 0.0
    %625 = vmatpush1.msra.mxu0 0.0
    %626 = vmatprep.subr.mxu0 0.0
    %627 = vmatpush1.msra.mxu0 0.0
    %628 = vmatprep.subr.mxu0 0.0
    %629 = vmatpush1.msra.mxu0 0.0
    %630 = vmatprep.subr.mxu0 0.0
    %631 = vmatpush1.msra.mxu0 0.0
    %632 = vmatprep.subr.mxu0 0.0
    %633 = vmatpush1.msra.mxu0 0.0
    %634 = vmatprep.subr.mxu0 0.0
    %635 = vmatpush1.msra.mxu0 0.0
    %636 = vmatprep.subr.mxu0 0.0
    %637 = vmatpush1.msra.mxu0 0.0
    %638 = vmatprep.subr.mxu0 0.0
    %639 = vmatpush1.msra.mxu0 0.0
    %640 = vmatprep.subr.mxu0 0.0
    %641 = vmatpush1.msra.mxu0 0.0
    %642 = vmatprep.subr.mxu0 0.0
    %643 = vmatpush1.msra.mxu0 0.0
    %644 = vmatprep.subr.mxu0 0.0
    %645 = vmatpush1.msra.mxu0 0.0
    %646 = vmatprep.subr.mxu0 0.0
    %647 = vmatpush1.msra.mxu0 0.0
    %648 = vmatprep.subr.mxu0 0.0
    %649 = vmatpush1.msra.mxu0 0.0
    %650 = vmatprep.subr.mxu0 0.0
    %651 = vmatpush1.msra.mxu0 0.0
    %652 = vmatprep.subr.mxu0 0.0
    %653 = vmatpush1.msra.mxu0 0.0
    %654 = vmatprep.subr.mxu0 0.0
    %655 = vmatpush1.msra.mxu0 0.0
    %656 = vmatprep.subr.mxu0 0.0
    %657 = vmatpush1.msra.mxu0 0.0
    %658 = vmatprep.subr.mxu0 0.0
    %659 = vmatpush1.msra.mxu0 0.0
    %660 = vmatprep.subr.mxu0 0.0
    %661 = vmatpush1.msra.mxu0 0.0
    %662 = vmatprep.subr.mxu0 0.0
    %663 = vmatpush1.msra.mxu0 0.0
    %664 = vmatprep.subr.mxu0 0.0
    %665 = vmatpush1.msra.mxu0 0.0
    %666 = vmatprep.subr.mxu0 0.0
    %667 = vmatpush1.msra.mxu0 0.0
    %668 = vmatprep.subr.mxu0 0.0
    %669 = vmatpush1.msra.mxu0 0.0
    %670 = vmatprep.subr.mxu0 0.0
    %671 = vmatpush1.msra.mxu0 0.0
    %672 = vmatprep.subr.mxu0 0.0
    %673 = vmatpush1.msra.mxu0 0.0
    %674 = vmatprep.subr.mxu0 0.0
    %675 = vmatpush1.msra.mxu0 0.0
    %676 = vmatprep.mubr.f32.mxu0 0.0
    %677 = vmatmul.mubr.f32.gmra.mrb[0].mxu0 %v610
    %v678 = vpop.f32.mrb[0].mxu0
    %v679 = vadd.f32 0.0, %v678
    %v680 = vpop.f32.mrb[0].mxu0
    %681 = vdwg.mxu0
    %682 = vmatprep.subr.mxu0 0.0
    %683 = vmatpush1.msra.mxu0 %v679
    %684 = vmatprep.subr.mxu0 0.0
    %685 = vmatpush1.msra.mxu0 0.0
    %686 = vmatprep.subr.mxu0 0.0
    %687 = vmatpush1.msra.mxu0 0.0
    %688 = vmatprep.subr.mxu0 0.0
    %689 = vmatpush1.msra.mxu0 0.0
    %690 = vmatprep.subr.mxu0 0.0
    %691 = vmatpush1.msra.mxu0 0.0
    %692 = vmatprep.subr.mxu0 0.0
    %693 = vmatpush1.msra.mxu0 0.0
    %694 = vmatprep.subr.mxu0 0.0
    %695 = vmatpush1.msra.mxu0 0.0
    %696 = vmatprep.subr.mxu0 0.0
    %697 = vmatpush1.msra.mxu0 0.0
    %698 = vmatprep.subr.mxu0 0.0
    %699 = vmatpush1.msra.mxu0 0.0
    %700 = vmatprep.subr.mxu0 0.0
    %701 = vmatpush1.msra.mxu0 0.0
    %702 = vmatprep.subr.mxu0 0.0
    %703 = vmatpush1.msra.mxu0 0.0
    %704 = vmatprep.subr.mxu0 0.0
    %705 = vmatpush1.msra.mxu0 0.0
    %706 = vmatprep.subr.mxu0 0.0
    %707 = vmatpush1.msra.mxu0 0.0
    %708 = vmatprep.subr.mxu0 0.0
    %709 = vmatpush1.msra.mxu0 0.0
    %710 = vmatprep.subr.mxu0 0.0
    %711 = vmatpush1.msra.mxu0 0.0
    %712 = vmatprep.subr.mxu0 0.0
    %713 = vmatpush1.msra.mxu0 0.0
    %714 = vmatprep.subr.mxu0 0.0
    %715 = vmatpush1.msra.mxu0 0.0
    %716 = vmatprep.subr.mxu0 0.0
    %717 = vmatpush1.msra.mxu0 0.0
    %718 = vmatprep.subr.mxu0 0.0
    %719 = vmatpush1.msra.mxu0 0.0
    %720 = vmatprep.subr.mxu0 0.0
    %721 = vmatpush1.msra.mxu0 0.0
    %722 = vmatprep.subr.mxu0 0.0
    %723 = vmatpush1.msra.mxu0 0.0
    %724 = vmatprep.subr.mxu0 0.0
    %725 = vmatpush1.msra.mxu0 0.0
    %726 = vmatprep.subr.mxu0 0.0
    %727 = vmatpush1.msra.mxu0 0.0
    %728 = vmatprep.subr.mxu0 0.0
    %729 = vmatpush1.msra.mxu0 0.0
    %730 = vmatprep.subr.mxu0 0.0
    %731 = vmatpush1.msra.mxu0 0.0
    %732 = vmatprep.subr.mxu0 0.0
    %733 = vmatpush1.msra.mxu0 0.0
    %734 = vmatprep.subr.mxu0 0.0
    %735 = vmatpush1.msra.mxu0 0.0
    %736 = vmatprep.subr.mxu0 0.0
    %737 = vmatpush1.msra.mxu0 0.0
    %738 = vmatprep.subr.mxu0 0.0
    %739 = vmatpush1.msra.mxu0 0.0
    %740 = vmatprep.subr.mxu0 0.0
    %741 = vmatpush1.msra.mxu0 0.0
    %742 = vmatprep.subr.mxu0 0.0
    %743 = vmatpush1.msra.mxu0 0.0
    %744 = vmatprep.subr.mxu0 0.0
    %745 = vmatpush1.msra.mxu0 0.0
    %746 = vmatprep.mubr.f32.mxu0 0.0
    %747 = vmatmul.mubr.f32.gmra.mrb[0].mxu0 %v183
    %v748 = vpop.f32.mrb[0].mxu0
    %v749 = vadd.f32 0.0, %v748
    %v750 = vpop.f32.mrb[0].mxu0
    %751 = vdwg.mxu0
    %v752 = vmul.f32 %v679, %v679
    %753 = vmatprep.subr.mxu0 0.0
    %754 = vmatpush1.msra.mxu0 %v752
    %755 = vmatprep.subr.mxu0 0.0
    %756 = vmatpush1.msra.mxu0 0.0
    %757 = vmatprep.subr.mxu0 0.0
    %758 = vmatpush1.msra.mxu0 0.0
    %759 = vmatprep.subr.mxu0 0.0
    %760 = vmatpush1.msra.mxu0 0.0
    %761 = vmatprep.subr.mxu0 0.0
    %762 = vmatpush1.msra.mxu0 0.0
    %763 = vmatprep.subr.mxu0 0.0
    %764 = vmatpush1.msra.mxu0 0.0
    %765 = vmatprep.subr.mxu0 0.0
    %766 = vmatpush1.msra.mxu0 0.0
    %767 = vmatprep.subr.mxu0 0.0
    %768 = vmatpush1.msra.mxu0 0.0
    %769 = vmatprep.subr.mxu0 0.0
    %770 = vmatpush1.msra.mxu0 0.0
    %771 = vmatprep.subr.mxu0 0.0
    %772 = vmatpush1.msra.mxu0 0.0
    %773 = vmatprep.subr.mxu0 0.0
    %774 = vmatpush1.msra.mxu0 0.0
    %775 = vmatprep.subr.mxu0 0.0
    %776 = vmatpush1.msra.mxu0 0.0
    %777 = vmatprep.subr.mxu0 0.0
    %778 = vmatpush1.msra.mxu0 0.0
    %779 = vmatprep.subr.mxu0 0.0
    %780 = vmatpush1.msra.mxu0 0.0
    %781 = vmatprep.subr.mxu0 0.0
    %782 = vmatpush1.msra.mxu0 0.0
    %783 = vmatprep.subr.mxu0 0.0
    %784 = vmatpush1.msra.mxu0 0.0
    %785 = vmatprep.subr.mxu0 0.0
    %786 = vmatpush1.msra.mxu0 0.0
    %787 = vmatprep.subr.mxu0 0.0
    %788 = vmatpush1.msra.mxu0 0.0
    %789 = vmatprep.subr.mxu0 0.0
    %790 = vmatpush1.msra.mxu0 0.0
    %791 = vmatprep.subr.mxu0 0.0
    %792 = vmatpush1.msra.mxu0 0.0
    %793 = vmatprep.subr.mxu0 0.0
    %794 = vmatpush1.msra.mxu0 0.0
    %795 = vmatprep.subr.mxu0 0.0
    %796 = vmatpush1.msra.mxu0 0.0
    %797 = vmatprep.subr.mxu0 0.0
    %798 = vmatpush1.msra.mxu0 0.0
    %799 = vmatprep.subr.mxu0 0.0
    %800 = vmatpush1.msra.mxu0 0.0
    %801 = vmatprep.subr.mxu0 0.0
    %802 = vmatpush1.msra.mxu0 0.0
    %803 = vmatprep.subr.mxu0 0.0
    %804 = vmatpush1.msra.mxu0 0.0
    %805 = vmatprep.subr.mxu0 0.0
    %806 = vmatpush1.msra.mxu0 0.0
    %807 = vmatprep.subr.mxu0 0.0
    %808 = vmatpush1.msra.mxu0 0.0
    %809 = vmatprep.subr.mxu0 0.0
    %810 = vmatpush1.msra.mxu0 0.0
    %811 = vmatprep.subr.mxu0 0.0
    %812 = vmatpush1.msra.mxu0 0.0
    %813 = vmatprep.subr.mxu0 0.0
    %814 = vmatpush1.msra.mxu0 0.0
    %815 = vmatprep.subr.mxu0 0.0
    %816 = vmatpush1.msra.mxu0 0.0
    %817 = vmatprep.mubr.f32.mxu0 0.0
    %818 = vmatmul.mubr.f32.gmra.mrb[0].mxu0 %v183
    %v819 = vpop.f32.mrb[0].mxu0
    %v820 = vadd.f32 0.0, %v819
    %v821 = vpop.f32.mrb[0].mxu0
    %822 = vdwg.mxu0
    %v823 = vmul.f32 %v749, 0.125
    %v824 = vmul.f32 %v820, 0.125
    %v825 = vmul.f32 %v823, %v823
    %v826 = vsub.f32 %v824, %v825
    %v827 = vlaneseq
    %v828 = vshrl.u32 %v827, 7
    %v829 = vsub.s32 0, %v828
    %v830 = vrot.slane %v823, %v829
    %v831 = vsub.f32 %v679, %v830
    %v832 = vadd.f32 %v826, 1e-05
    %v833 = vrsqrt.pop %v832
    %v834 = vlaneseq
    %v835 = vshrl.u32 %v834, 7
    %v836 = vsub.s32 0, %v835
    %v837 = vrot.slane %v833, %v836
    %v838 = vmul.f32 %v831, %v837
    %v840 = vlaneseq
    %v841 = vshrl.u32 %v840, 7
    %v842 = vsub.s32 0, %v841
    %v843 = vrot.slane %v79, %v842
    %v845 = vmul.f32 %v838, %v843
    %v847 = vlaneseq
    %v848 = vshrl.u32 %v847, 7
    %v849 = vsub.s32 0, %v848
    %v850 = vrot.slane %v80, %v849
    %v852 = vadd.f32 %v845, %v850
    %vm853 = vcmp.ge.f32.partialorder %v852, 0.0
    %v854 = vstv %s104
    %v855 = vmul.f32 %v854, %v852
    %v856 = vsel %vm853, %v852, %v855
    %v857 = vmax.f32 %v856, -1000.0
    %v858 = vmin.f32 %v857, 1000.0
    %v860 = vlaneseq
    %v861 = vshrl.u32 %v860, 7
    %v862 = vsub.s32 0, %v861
    %v863 = vrot.slane %v81, %v862
    %v864 = vlaneseq
    %v865 = vshrl.u32 %v864, 7
    %v866 = vsub.s32 1, %v865
    %v867 = vrot.slane %v81, %v866
    %v868 = vlaneseq
    %v869 = vshrl.u32 %v868, 7
    %v870 = vsub.s32 2, %v869
    %v871 = vrot.slane %v81, %v870
    %v876 = vsel %vm360, %v858, 0
    %878 = vmatprep.subr.mxu0 %v91
    %879 = vmatpush1.msra.mxu0 %v90
    %880 = vmatprep.subr.mxu0 %v94
    %881 = vmatpush1.msra.mxu0 %v93
    %882 = vmatprep.subr.mxu0 %v97
    %883 = vmatpush1.msra.mxu0 %v96
    %884 = vmatprep.subr.mxu0 %v100
    %885 = vmatpush1.msra.mxu0 %v99
    %886 = vmatprep.subr.mxu0 0.0
    %887 = vmatpush1.msra.mxu0 0.0
    %888 = vmatprep.subr.mxu0 0.0
    %889 = vmatpush1.msra.mxu0 0.0
    %890 = vmatprep.subr.mxu0 0.0
    %891 = vmatpush1.msra.mxu0 0.0
    %892 = vmatprep.subr.mxu0 0.0
    %893 = vmatpush1.msra.mxu0 0.0
    %894 = vmatprep.subr.mxu0 0.0
    %895 = vmatpush1.msra.mxu0 0.0
    %896 = vmatprep.subr.mxu0 0.0
    %897 = vmatpush1.msra.mxu0 0.0
    %898 = vmatprep.subr.mxu0 0.0
    %899 = vmatpush1.msra.mxu0 0.0
    %900 = vmatprep.subr.mxu0 0.0
    %901 = vmatpush1.msra.mxu0 0.0
    %902 = vmatprep.subr.mxu0 0.0
    %903 = vmatpush1.msra.mxu0 0.0
    %904 = vmatprep.subr.mxu0 0.0
    %905 = vmatpush1.msra.mxu0 0.0
    %906 = vmatprep.subr.mxu0 0.0
    %907 = vmatpush1.msra.mxu0 0.0
    %908 = vmatprep.subr.mxu0 0.0
    %909 = vmatpush1.msra.mxu0 0.0
    %910 = vmatprep.subr.mxu0 0.0
    %911 = vmatpush1.msra.mxu0 0.0
    %912 = vmatprep.subr.mxu0 0.0
    %913 = vmatpush1.msra.mxu0 0.0
    %914 = vmatprep.subr.mxu0 0.0
    %915 = vmatpush1.msra.mxu0 0.0
    %916 = vmatprep.subr.mxu0 0.0
    %917 = vmatpush1.msra.mxu0 0.0
    %918 = vmatprep.subr.mxu0 0.0
    %919 = vmatpush1.msra.mxu0 0.0
    %920 = vmatprep.subr.mxu0 0.0
    %921 = vmatpush1.msra.mxu0 0.0
    %922 = vmatprep.subr.mxu0 0.0
    %923 = vmatpush1.msra.mxu0 0.0
    %924 = vmatprep.subr.mxu0 0.0
    %925 = vmatpush1.msra.mxu0 0.0
    %926 = vmatprep.subr.mxu0 0.0
    %927 = vmatpush1.msra.mxu0 0.0
    %928 = vmatprep.subr.mxu0 0.0
    %929 = vmatpush1.msra.mxu0 0.0
    %930 = vmatprep.subr.mxu0 0.0
    %931 = vmatpush1.msra.mxu0 0.0
    %932 = vmatprep.subr.mxu0 0.0
    %933 = vmatpush1.msra.mxu0 0.0
    %934 = vmatprep.subr.mxu0 0.0
    %935 = vmatpush1.msra.mxu0 0.0
    %936 = vmatprep.subr.mxu0 0.0
    %937 = vmatpush1.msra.mxu0 0.0
    %938 = vmatprep.subr.mxu0 0.0
    %939 = vmatpush1.msra.mxu0 0.0
    %940 = vmatprep.subr.mxu0 0.0
    %941 = vmatpush1.msra.mxu0 0.0
    %942 = vmatprep.mubr.f32.mxu0 0.0
    %943 = vmatmul.mubr.f32.gmra.mrb[0].mxu0 %v876
    %v944 = vpop.f32.mrb[0].mxu0
    %v945 = vadd.f32 %v863, %v944
    %v946 = vpop.f32.mrb[0].mxu0
    %v947 = vadd.f32 %v867, %v946
    %948 = vdwg.mxu0
    %949 = vmatprep.subr.mxu0 0.0
    %950 = vmatpush1.msra.mxu0 %v92
    %951 = vmatprep.subr.mxu0 0.0
    %952 = vmatpush1.msra.mxu0 %v95
    %953 = vmatprep.subr.mxu0 0.0
    %954 = vmatpush1.msra.mxu0 %v98
    %955 = vmatprep.subr.mxu0 0.0
    %956 = vmatpush1.msra.mxu0 %v101
    %957 = vmatprep.subr.mxu0 0.0
    %958 = vmatpush1.msra.mxu0 0.0
    %959 = vmatprep.subr.mxu0 0.0
    %960 = vmatpush1.msra.mxu0 0.0
    %961 = vmatprep.subr.mxu0 0.0
    %962 = vmatpush1.msra.mxu0 0.0
    %963 = vmatprep.subr.mxu0 0.0
    %964 = vmatpush1.msra.mxu0 0.0
    %965 = vmatprep.subr.mxu0 0.0
    %966 = vmatpush1.msra.mxu0 0.0
    %967 = vmatprep.subr.mxu0 0.0
    %968 = vmatpush1.msra.mxu0 0.0
    %969 = vmatprep.subr.mxu0 0.0
    %970 = vmatpush1.msra.mxu0 0.0
    %971 = vmatprep.subr.mxu0 0.0
    %972 = vmatpush1.msra.mxu0 0.0
    %973 = vmatprep.subr.mxu0 0.0
    %974 = vmatpush1.msra.mxu0 0.0
    %975 = vmatprep.subr.mxu0 0.0
    %976 = vmatpush1.msra.mxu0 0.0
    %977 = vmatprep.subr.mxu0 0.0
    %978 = vmatpush1.msra.mxu0 0.0
    %979 = vmatprep.subr.mxu0 0.0
    %980 = vmatpush1.msra.mxu0 0.0
    %981 = vmatprep.subr.mxu0 0.0
    %982 = vmatpush1.msra.mxu0 0.0
    %983 = vmatprep.subr.mxu0 0.0
    %984 = vmatpush1.msra.mxu0 0.0
    %985 = vmatprep.subr.mxu0 0.0
    %986 = vmatpush1.msra.mxu0 0.0
    %987 = vmatprep.subr.mxu0 0.0
    %988 = vmatpush1.msra.mxu0 0.0
    %989 = vmatprep.subr.mxu0 0.0
    %990 = vmatpush1.msra.mxu0 0.0
    %991 = vmatprep.subr.mxu0 0.0
    %992 = vmatpush1.msra.mxu0 0.0
    %993 = vmatprep.subr.mxu0 0.0
    %994 = vmatpush1.msra.mxu0 0.0
    %995 = vmatprep.subr.mxu0 0.0
    %996 = vmatpush1.msra.mxu0 0.0
    %997 = vmatprep.subr.mxu0 0.0
    %998 = vmatpush1.msra.mxu0 0.0
    %999 = vmatprep.subr.mxu0 0.0
    %1000 = vmatpush1.msra.mxu0 0.0
    %1001 = vmatprep.subr.mxu0 0.0
    %1002 = vmatpush1.msra.mxu0 0.0
    %1003 = vmatprep.subr.mxu0 0.0
    %1004 = vmatpush1.msra.mxu0 0.0
    %1005 = vmatprep.subr.mxu0 0.0
    %1006 = vmatpush1.msra.mxu0 0.0
    %1007 = vmatprep.subr.mxu0 0.0
    %1008 = vmatpush1.msra.mxu0 0.0
    %1009 = vmatprep.subr.mxu0 0.0
    %1010 = vmatpush1.msra.mxu0 0.0
    %1011 = vmatprep.subr.mxu0 0.0
    %1012 = vmatpush1.msra.mxu0 0.0
    %1013 = vmatprep.mubr.f32.mxu0 0.0
    %1014 = vmatmul.mubr.f32.gmra.mrb[0].mxu0 %v876
    %v1015 = vpop.f32.mrb[0].mxu0
    %v1016 = vadd.f32 %v871, %v1015
    %v1017 = vpop.f32.mrb[0].mxu0
    %1018 = vdwg.mxu0
    %v1019 = vmax.f32 %v947, -30.0
    %v1020 = vmin.f32 %v1019, 30.0
    %v1021 = vmax.f32 %v1016, 0.01
    %v1022 = vmin.f32 %v1021, 100.0
    %v1023 = vsel %vm181, %v945, -inf
    %1024 = vmax.xlane.f32.xlu0 %v1023
    %v1025 = vpop.xlane.xlu0 %1024
    %v1026 = vsub.f32 %v945, %v1025
    %v1027 = vmul.f32 %v1026, 1.442695
    %v1028 = vpow.pop %v1027
    %v1029 = vsel %vm181, %v1028, 0.0
    %1030 = vadd.xlane.f32.xlu0 %v1029
    %v1031 = vpop.xlane.xlu0 %1030
    %v1032 = vrcp.pop %v1031
    %v1033 = vmul.f32 %v1028, %v1032
    %v1034 = vmax.f32 %v1022, 0.0
    %vm1035 = vcmp.ne.f32.partialorder %v1022, %v1022
    %v1036 = vadd.f32 %v1022, 0.0
    %v1037 = vand.u32 2147483647, %v1022
    %v1038 = vsub.f32 0.0, %v1037
    %v1039 = vmul.f32 %v1038, 1.442695
    %v1040 = vpow.pop %v1039
    %v1041 = vadd.f32 %v1040, 1.0
    %v1042 = vlog2.pop %v1041
    %v1043 = vmul.f32 %v1042, 0.6931472
    %v1044 = vmul.f32 -0.5, %v1040
    %v1045 = vadd.f32 %v1044, 1.0
    %v1046 = vmul.f32 %v1045, %v1040
    %v1047 = vand.u32 2147483647, %v1040
    %vm1048 = vcmp.lt.f32.partialorder %v1047, 0.0004427343
    %v1049 = vsel %vm1048, %v1046, %v1043
    %v1050 = vadd.f32 %v1034, %v1049
    %v1051 = vsel %vm1035, %v1036, %v1050
    %v1052 = vmul.f32 %v74, 1.442695
    %v1053 = vpow.pop %v1052
    %v1054 = vsub.f32 %v1053, 1.0
    %v1055 = vadd.f32 %v1054, 1e-06
    %v1056 = vlog2.pop %v1055
    %v1057 = vmul.f32 %v1056, 0.6931472
    %1059 = vset.pattern.permute.xlu0 0
    %1060 = vperm.xlu0 %1059, %v1057
    %v1061 = vpop.permute.xlu0 %1060
    %v1063 = vsub.f32 %v1061, %v1020
    %v1064 = vrcp.pop %v1051
    %v1065 = vmul.f32 %v1063, %v1064
    %v1066 = vmul.f32 %v1065, 0.70710677
    %v1067 = verf.f32.pop %v1066
    %v1068 = vadd.f32 %v1067, 1.0
    %v1069 = vmul.f32 %v1068, 0.5
    %v1070 = vmul.f32 %v1033, %v1069
    %v1071 = vsel %vm181, %v1070, 0.0
    %1072 = vadd.xlane.f32.xlu0 %v1071
    %v1073 = vpop.xlane.xlu0 %1072
    %v1074 = vsub.f32 1.0, %v1073
    %v1075 = vmul.f32 %v1065, -0.5
    %v1076 = vmul.f32 %v1075, %v1065
    %v1077 = vlog2.pop %v1051
    %v1078 = vmul.f32 %v1077, 0.6931472
    %v1079 = vsub.f32 %v1076, %v1078
    %v1080 = vsub.f32 %v1079, 0.9189385
    %v1081 = vsel %vm181, %v1080, -inf
    %1082 = vmax.xlane.f32.xlu0 %v1081
    %v1083 = vpop.xlane.xlu0 %1082
    %v1084 = vsub.f32 %v1080, %v1083
    %v1085 = vmul.f32 %v1084, 1.442695
    %v1086 = vpow.pop %v1085
    %v1087 = vmul.f32 %v1033, %v1086
    %v1088 = vsel %vm181, %v1087, 0.0
    %1089 = vadd.xlane.f32.xlu0 %v1088
    %v1090 = vpop.xlane.xlu0 %1089
    %v1091 = vadd.f32 %v1090, 1e-06
    %v1092 = vlog2.pop %v1091
    %v1093 = vmul.f32 %v1092, 0.6931472
    %v1094 = vadd.f32 %v1093, %v1083
    %v1095 = vsub.f32 %v74, %v1057
    %v1096 = vadd.f32 %v1094, %v1095
    %v1097 = vmul.f32 %v1096, 1.442695
    %v1098 = vpow.pop %v1097
    %vm1099 = vcmask 7168
    %1100 = vst.msk [vmem:[%s6] sm:$0xff] %vm1099, %v1074
    %v1101 = vadd.f32 %v1074, 1e-06
    %v1102 = vlog2.pop %v1101
    %v1103 = vmul.f32 %v1102, 0.6931472
    %v1104 = vsub.f32 0.0, %v1103
    %vm1105 = vcmask 15368
    %1106 = vst.msk [vmem:[%s6] sm:$0xff] %vm1105, %v1104
    %v1107 = vrcp.pop %v1074
    %v1108 = vmul.f32 %v1098, %v1107
    %1110 = vrot.lane.b32.xlu0 %v1108, 2
    %v1111 = vpop.permute.xlu0 %1110
    %vm1113 = vcmask 23568
    %1114 = vst.msk [vmem:[%s6] sm:$0xff] %vm1113, %v1111
    // Predicated region
    $region42: #{tpu_custom_call.1} parent=1 // pred_check
      _
    $region43: #{tpu_custom_call.1} parent=1 // pred_check_branch
      %1116 = sbr.rel (0) target = $region45
    $region44: #{tpu_custom_call.1} parent=1 // pred_region
      _
    $region45: #{tpu_custom_call.1} parent=1 // pred_fallthru
      _
    // Predicated region
    $region46: #{tpu_custom_call.1} parent=1 // pred_check
      _
    $region47: #{tpu_custom_call.1} parent=1 // pred_check_branch
      %1118 = sbr.rel (0) target = $region49
    $region48: #{tpu_custom_call.1} parent=1 // pred_region
      _
    $region49: #{tpu_custom_call.1} parent=1 // pred_fallthru
      _
    %1119 = vsyncpa [#allocation3], 1
    %1120 = vsyncpa [#allocation6], 1
    %1121 = vsyncpa [#allocation4], 1

</llo_original>
